<compile_context>
chip_gen: v6e
topology: v6e:2x2x1
jax: 0.10.0
libtpu: 0.0.40
codegen_flags: <defaults>
</compile_context>

<pallas_src>
import numpy as np
import jax
import jax.numpy as jnp
from jax.experimental import pallas as pl
from jax.experimental.pallas import tpu as pltpu

EPS = 1e-5          # BatchNorm2d default eps
BF16 = jnp.bfloat16
LANE = 128


# ----------------------------------------------------------------------------
# Host-side static interpolation matrix (bilinear, align_corners=True)
# ----------------------------------------------------------------------------
def bilinear_matrix(n_in, n_out):
    """PyTorch nn.Upsample(mode='bilinear', align_corners=True) interpolation matrix."""
    if n_in == 1:
        return np.ones((n_out, 1), np.float32)
    src = np.arange(n_out) * (n_in - 1) / (n_out - 1)
    i0 = np.clip(np.floor(src).astype(np.int64), 0, n_in - 2)
    frac = (src - i0).astype(np.float32)
    m = np.zeros((n_out, n_in), np.float32)
    m[np.arange(n_out), i0] = 1.0 - frac
    m[np.arange(n_out), i0 + 1] = frac
    return m


# ----------------------------------------------------------------------------
# DecoderBlock forward (attention=False) -- one fused pallas_call
# ----------------------------------------------------------------------------
def decoder_block_forward(x_in, context, params, batch_tile=None):
    B, Cin, H, W = x_in.shape
    Bc, Cc, Hc, Wc = context.shape
    H2, W2 = 2 * H, 2 * W
    assert Bc == B, "batch mismatch between x_in and context"
    assert (Hc, Wc) == (H2, W2), (
        f"context spatial dims {(Hc, Wc)} must equal 2*img_size {(H2, W2)}")
    Cout = params["c33"]["w"].shape[0]
    assert params["c33"]["w"].shape[1] == 2 * Cc

    # --- batch tiling: keep >=2 grid steps when possible (v7x: 2 TCs split the
    #     "parallel" axis), batch the rest per step (v5e/v6e MXU row fill). -----
    if batch_tile is None:
        batch_tile = B // 2 if (B >= 2 and B % 2 == 0) else 1
    bt = int(batch_tile)
    assert B % bt == 0
    nblk = B // bt

    # --- pad channel counts so every flattened last dim is a multiple of 128 ---
    rep = LANE // int(np.gcd(W2, LANE))
    cpad = lambda c: int(-(-c // rep) * rep)
    Cinp, Ccp, Coutp = cpad(Cin), cpad(Cc), cpad(Cout)
    Lu, Lc, Lo = W2 * Cinp, W2 * Ccp, W2 * Coutp
    rows_in, rows = bt * H, bt * H2

    # --- one layout change per input: NCHW -> zero-channel-padded NHWC rows ----
    xf = jnp.pad(jnp.transpose(x_in, (0, 2, 3, 1)),
                 ((0, 0), (0, 0), (0, 0), (0, Cinp - Cin))).reshape(B * H, W * Cinp)
    cf = jnp.pad(jnp.transpose(context, (0, 2, 3, 1)),
                 ((0, 0), (0, 0), (0, 0), (0, Ccp - Cc))).reshape(B * H2, Lc)

    # --- static interpolation / column-band matrices (host numpy, trace-time) --
    rh = bilinear_matrix(H, H2)                                       # (H2, H)
    rw = bilinear_matrix(W, W2)                                       # (W2, W)
    rhb = np.kron(np.eye(bt, dtype=np.float32), rh)                   # (bt*H2, bt*H)
    ktw = np.kron(rw, np.eye(Cinp, dtype=np.float32)).T               # (W*Cinp, Lu)
    bx = [np.eye(W2, k=1 - kx, dtype=np.float32) for kx in range(3)]  # col shift bands

    # --- fold BatchNorm (eval mode) into conv weights, zero-pad channels -------
    def fold(p, cop, cip):
        s = p["gamma"] * jax.lax.rsqrt(p["var"] + EPS)
        w = p["w"] * s[:, None, None, None]
        sh = (p["b"] - p["mean"]) * s + p["beta"]
        w = jnp.pad(w, ((0, cop - w.shape[0]), (0, cip - w.shape[1]), (0, 0), (0, 0)))
        return w, jnp.pad(sh, (0, cop - sh.shape[0]))

    def banded_3x3(w_oihw):
        # (Co, Ci, 3, 3) -> (3, W2*Ci, W2*Co): horizontal shift + channel mix folded
        # into one banded matrix per kernel row (vertical shift done in-kernel).
        return jnp.stack([
            sum(jnp.kron(jnp.asarray(bx[kx]), w_oihw[:, :, ky, kx].T)
                for kx in range(3))
            for ky in range(3)])

    tile_row = lambda v: jnp.tile(v, W2)[None, :]       # per-channel -> per-lane row

    w_up, sh_up = fold(params["up"], Cinp, Cinp)
    mu = banded_3x3(w_up).astype(BF16)                  # (3, Lu, Lu)
    su = tile_row(sh_up)                                # (1, Lu)  f32

    w11f, sh11 = fold(params["c11"], Ccp, Cinp)
    w11 = jnp.kron(jnp.eye(W2, dtype=jnp.float32), w11f[:, :, 0, 0].T).astype(BF16)
    s11 = tile_row(sh11)

    wskf, shsk = fold(params["skip"], Ccp, Ccp)
    wsk = jnp.kron(jnp.eye(W2, dtype=jnp.float32), wskf[:, :, 0, 0].T).astype(BF16)
    ssk = tile_row(shsk)

    # final Conv3x3(2Cc->Cout), norm=False: split the weight into its two channel
    # halves (lane-concat in-kernel) and stack -> one matmul per kernel row.
    w33 = params["c33"]["w"]
    pad33 = lambda w: jnp.pad(w, ((0, Coutp - Cout), (0, Ccp - Cc), (0, 0), (0, 0)))
    mz = jnp.concatenate([banded_3x3(pad33(w33[:, :Cc])),
                          banded_3x3(pad33(w33[:, Cc:]))], axis=1).astype(BF16)
    b33 = tile_row(jnp.pad(params["c33"]["b"], (0, Coutp - Cout)))

    rhb16 = jnp.asarray(rhb, BF16)
    ktw16 = jnp.asarray(ktw, BF16)

    f32 = jnp.float32

    def mm(a, b):   # bf16 MXU matmul, f32 accumulation
        return jnp.dot(a.astype(BF16), b.astype(BF16), preferred_element_type=f32)

    def shift_rows(v, ky):
        # vertical part of the 3x3 conv (padding=1): out row i uses in row i+ky-1.
        # Static sublane slices + a zero row (no MXU matmul, no sy operand).
        if ky == 1:
            return v
        zero = jnp.zeros((1, v.shape[1]), v.dtype)
        if ky == 0:
            s = jnp.concatenate([zero, v[:-1]], axis=0)      # s[i] = v[i-1]
        else:
            s = jnp.concatenate([v[1:], zero], axis=0)       # s[i] = v[i+1]
        if bt > 1:   # zero the rows that crossed an image boundary inside the block
            r = jax.lax.broadcasted_iota(jnp.int32, v.shape, 0)
            bad = (r % H2) == (0 if ky == 0 else H2 - 1)
            s = jnp.where(bad, 0.0, s)
        return s

    def kernel(x_ref, ctx_ref, rhb_ref, ktw_ref, mu_ref, su_ref,
               w11_ref, s11_ref, wsk_ref, ssk_ref, mz_ref, b33_ref, o_ref):
        # bilinear x2 upsample (align_corners=True): U = (I_bt (x) Rh) @ X @ kron(Rw, I)^T
        u = mm(mm(rhb_ref[...], x_ref[...]), ktw_ref[...])            # (rows, Lu)
        # Conv3x3(Cin->Cin) + folded BN
        y1 = su_ref[...]
        for ky in range(3):
            y1 = y1 + mm(shift_rows(u, ky), mu_ref[ky])               # (rows, Lu)
        # Conv1x1(Cin->Cc) + folded BN
        y2 = mm(y1, w11_ref[...]) + s11_ref[...]                      # (rows, Lc)
        # skip path: Conv1x1(Cc->Cc) + folded BN on context
        xa = mm(ctx_ref[...], wsk_ref[...]) + ssk_ref[...]            # (rows, Lc)
        # final Conv3x3(2Cc->Cout): concat the two 128-lane-aligned halves
        z = jnp.concatenate([y2, xa], axis=-1)                        # (rows, 2*Lc)
        out = b33_ref[...]
        for ky in range(3):
            out = out + mm(shift_rows(z, ky), mz_ref[ky])             # (rows, Lo)
        o_ref[...] = out.astype(o_ref.dtype)

    # --- advisory cost estimate -------------------------------------------------
    mmf = lambda m, k, n: 2 * m * k * n
    per_block = (mmf(rows, rows_in, W * Cinp) + mmf(rows, W * Cinp, Lu)
                 + 3 * mmf(rows, Lu, Lu) + mmf(rows, Lu, Lc)
                 + mmf(rows, Lc, Lc) + 3 * mmf(rows, 2 * Lc, Lo))
    bytes_accessed = int(4 * (xf.size + cf.size + B * H2 * Lo)
                         + 2 * (rhb16.size + ktw16.size + mu.size + w11.size
                                + wsk.size + mz.size)
                         + 4 * (su.size + s11.size + ssk.size + b33.size))
    cost = pl.CostEstimate(flops=int(nblk * per_block), transcendentals=0,
                           bytes_accessed=bytes_accessed)

    rmap = lambda b: (b, 0)
    wmap2 = lambda b: (0, 0)
    wmap3 = lambda b: (0, 0, 0)

    # NOTE: the weight operands have constant index_maps; pipeline_mode=pl.Buffered(1)
    # would save their double-buffer, but they are tiny here so it is left default.
    out_flat = pl.pallas_call(
        kernel,
        out_shape=jax.ShapeDtypeStruct((B * H2, Lo), jnp.float32),
        grid=(nblk,),
        in_specs=[
            pl.BlockSpec((rows_in, W * Cinp), rmap),    # x rows (flattened NHWC)
            pl.BlockSpec((rows, Lc), rmap),             # context rows
            pl.BlockSpec((rows, rows_in), wmap2),       # (I_bt kron Rh)  bf16
            pl.BlockSpec((W * Cinp, Lu), wmap2),        # kron(Rw, I)^T   bf16
            pl.BlockSpec((3, Lu, Lu), wmap3),           # up conv3x3 banded weights
            pl.BlockSpec((1, Lu), wmap2),               # up conv BN shift
            pl.BlockSpec((Lu, Lc), wmap2),              # conv1x1 weight (kron)
            pl.BlockSpec((1, Lc), wmap2),               # conv1x1 BN shift
            pl.BlockSpec((Lc, Lc), wmap2),              # skip conv1x1 weight (kron)
            pl.BlockSpec((1, Lc), wmap2),               # skip BN shift
            pl.BlockSpec((3, 2 * Lc, Lo), wmap3),       # final conv banded weights
            pl.BlockSpec((1, Lo), wmap2),               # final conv bias
        ],
        out_specs=pl.BlockSpec((rows, Lo), rmap),
        compiler_params=pltpu.CompilerParams(
            dimension_semantics=("parallel",),          # v7x: batch split over 2 TCs
            vmem_limit_bytes=32 * 1024 * 1024),
        cost_estimate=cost,
    )(xf, cf, rhb16, ktw16, mu, su, w11, s11, wsk, ssk, mz, b33)

    # --- single layout change on output: drop channel pad, rows -> NCHW --------
    out = out_flat.reshape(B, H2, W2, Coutp)[..., :Cout]
    out = jnp.transpose(out, (0, 3, 1, 2))
    return out, None


# ----------------------------------------------------------------------------
# Pure-JAX reference (lax convs + einsum upsample) for the correctness check
# ----------------------------------------------------------------------------
def reference_forward(x_in, context, p):
    def conv(x_nhwc, w_oihw, b, pad):
        w_hwio = jnp.transpose(w_oihw, (2, 3, 1, 0))
        y = jax.lax.conv_general_dilated(
            x_nhwc, w_hwio, (1, 1), pad,
            dimension_numbers=("NHWC", "HWIO", "NHWC"),
            precision=jax.lax.Precision.HIGHEST)
        return y + b

    def bn(x, d):
        s = d["gamma"] / jnp.sqrt(d["var"] + EPS)
        return x * s + (d["beta"] - d["mean"] * s)

    B, Cin, H, W = x_in.shape
    ctx = jnp.transpose(context, (0, 2, 3, 1))
    x_attn = bn(conv(ctx, p["skip"]["w"], p["skip"]["b"], "VALID"), p["skip"])
    rh = jnp.asarray(bilinear_matrix(H, 2 * H))
    rw = jnp.asarray(bilinear_matrix(W, 2 * W))
    xu = jnp.einsum("ph,bchw,qw->bcpq", rh, x_in, rw)
    xu = jnp.transpose(xu, (0, 2, 3, 1))
    y = bn(conv(xu, p["up"]["w"], p["up"]["b"], "SAME"), p["up"])
    y = bn(conv(y, p["c11"]["w"], p["c11"]["b"], "VALID"), p["c11"])
    z = jnp.concatenate([y, x_attn], axis=-1)
    out = conv(z, p["c33"]["w"], p["c33"]["b"], "SAME")
    return jnp.transpose(out, (0, 3, 1, 2)), None


# ----------------------------------------------------------------------------
# Deterministic parameter init (shapes follow the nn.Module __init__)
# ----------------------------------------------------------------------------
def conv_bn_init(key, cin, cout, ksz, with_bn=True):
    k = jax.random.split(key, 6)
    d = {
        "w": 0.1 * jax.random.normal(k[0], (cout, cin, ksz, ksz), jnp.float32),
        "b": 0.1 * jax.random.normal(k[1], (cout,), jnp.float32),
    }
    if with_bn:
        d["gamma"] = 1.0 + 0.1 * jax.random.normal(k[2], (cout,), jnp.float32)
        d["beta"] = 0.1 * jax.random.normal(k[3], (cout,), jnp.float32)
        d["mean"] = 0.1 * jax.random.normal(k[4], (cout,), jnp.float32)
        d["var"] = 1.0 + 0.5 * jnp.abs(jax.random.normal(k[5], (cout,), jnp.float32))
    return d


def init_params(key, cin, cc, cout):
    k = jax.random.split(key, 4)
    return {
        "skip": conv_bn_init(k[0], cc, cc, 1),        # Conv1x1(Cc->Cc) + BN
        "up":   conv_bn_init(k[1], cin, cin, 3),      # UpSampleBlock Conv3x3(Cin->Cin) + BN
        "c11":  conv_bn_init(k[2], cin, cc, 1),       # Conv1x1(Cin->Cc) + BN
        "c33":  conv_bn_init(k[3], 2 * cc, cout, 3, with_bn=False),  # Conv3x3, norm=False
    }


if __name__ == "__main__":
    B, Cin, Cout, Cc = 2, 4, 5, 6
    H, W = 8, 8                       # img_size; context spatial = 2 * img_size

    kx, kc = jax.random.split(jax.random.PRNGKey(0))
    x_in = jax.random.normal(kx, (B, Cin, H, W), jnp.float32)
    context = jax.random.normal(kc, (B, Cc, 2 * H, 2 * W), jnp.float32)
    params = init_params(jax.random.PRNGKey(1), Cin, Cc, Cout)

    fwd = jax.jit(decoder_block_forward)
    out, attn = fwd(x_in, context, params)
    out = jax.block_until_ready(out)

    ref, _ = reference_forward(x_in, context, params)
    assert out.shape == (B, Cout, 2 * H, 2 * W), out.shape
    assert attn is None
    # 2e-2 tolerance covers bf16 weights + bf16 MXU inputs with f32 accumulation.
    if not bool(jnp.allclose(out, ref, rtol=2e-2, atol=2e-2)):
        err = float(jnp.max(jnp.abs(out - ref)))
        raise AssertionError(f"Pallas output does not match reference (max abs err {err})")
    print("KERNEL_OK")
</pallas_src>

<mosaic_0001>
module attributes {stable_mosaic.version = 11 : i64} {
  func.func @kernel(%arg0: i32, %arg1: memref<8x64xf32, #tpu.memory_space<vmem>>, %arg2: memref<16x128xf32, #tpu.memory_space<vmem>>, %arg3: memref<16x8xbf16, #tpu.memory_space<vmem>>, %arg4: memref<64x128xbf16, #tpu.memory_space<vmem>>, %arg5: memref<3x128x128xbf16, #tpu.memory_space<vmem>>, %arg6: memref<1x128xf32, #tpu.memory_space<vmem>>, %arg7: memref<128x128xbf16, #tpu.memory_space<vmem>>, %arg8: memref<1x128xf32, #tpu.memory_space<vmem>>, %arg9: memref<128x128xbf16, #tpu.memory_space<vmem>>, %arg10: memref<1x128xf32, #tpu.memory_space<vmem>>, %arg11: memref<3x256x128xbf16, #tpu.memory_space<vmem>>, %arg12: memref<1x128xf32, #tpu.memory_space<vmem>>, %arg13: memref<16x128xf32, #tpu.memory_space<vmem>>) attributes {dimension_semantics = [#tpu.dimension_semantics<parallel>], iteration_bounds = array<i64: 2>, scalar_prefetch = 0 : i64, scratch_operands = 0 : i64, tpu.core_type = #tpu.core_type<tc>, window_params = [{transform_indices = @transform_0, window_bounds = array<i64: 8, 64>}, {transform_indices = @transform_1, window_bounds = array<i64: 16, 128>}, {pipeline_mode = #tpu.pipeline_mode<synchronous>, transform_indices = @transform_2, window_bounds = array<i64: 16, 8>}, {pipeline_mode = #tpu.pipeline_mode<synchronous>, transform_indices = @transform_3, window_bounds = array<i64: 64, 128>}, {pipeline_mode = #tpu.pipeline_mode<synchronous>, transform_indices = @transform_4, window_bounds = array<i64: 3, 128, 128>}, {pipeline_mode = #tpu.pipeline_mode<synchronous>, transform_indices = @transform_5, window_bounds = array<i64: 1, 128>}, {pipeline_mode = #tpu.pipeline_mode<synchronous>, transform_indices = @transform_6, window_bounds = array<i64: 128, 128>}, {pipeline_mode = #tpu.pipeline_mode<synchronous>, transform_indices = @transform_7, window_bounds = array<i64: 1, 128>}, {pipeline_mode = #tpu.pipeline_mode<synchronous>, transform_indices = @transform_8, window_bounds = array<i64: 128, 128>}, {pipeline_mode = #tpu.pipeline_mode<synchronous>, transform_indices = @transform_9, window_bounds = array<i64: 1, 128>}, {pipeline_mode = #tpu.pipeline_mode<synchronous>, transform_indices = @transform_10, window_bounds = array<i64: 3, 256, 128>}, {pipeline_mode = #tpu.pipeline_mode<synchronous>, transform_indices = @transform_11, window_bounds = array<i64: 1, 128>}, {transform_indices = @transform_12, window_bounds = array<i64: 16, 128>}]} {
    %c0 = arith.constant 0 : index
    %c0_0 = arith.constant 0 : index
    %0 = vector.load %arg3[%c0, %c0_0] : memref<16x8xbf16, #tpu.memory_space<vmem>>, vector<16x8xbf16>
    %c0_1 = arith.constant 0 : index
    %c0_2 = arith.constant 0 : index
    %1 = vector.load %arg1[%c0_1, %c0_2] : memref<8x64xf32, #tpu.memory_space<vmem>>, vector<8x64xf32>
    %2 = arith.truncf %1 : vector<8x64xf32> to vector<8x64xbf16>
    %cst = arith.constant dense<0.000000e+00> : vector<16x64xf32>
    %3 = tpu.matmul %0, %2, %cst {dimension_numbers = #tpu.dot_dimension_numbers<[1], [0], [0], [1], [0, 0, 1, 1], [], []>} : vector<16x8xbf16>, vector<8x64xbf16>, vector<16x64xf32> -> vector<16x64xf32>
    %c0_3 = arith.constant 0 : index
    %c0_4 = arith.constant 0 : index
    %4 = vector.load %arg4[%c0_3, %c0_4] : memref<64x128xbf16, #tpu.memory_space<vmem>>, vector<64x128xbf16>
    %5 = arith.truncf %3 : vector<16x64xf32> to vector<16x64xbf16>
    %cst_5 = arith.constant dense<0.000000e+00> : vector<16x128xf32>
    %6 = tpu.matmul %5, %4, %cst_5 {dimension_numbers = #tpu.dot_dimension_numbers<[1], [0], [0], [1], [0, 0, 1, 1], [], []>} : vector<16x64xbf16>, vector<64x128xbf16>, vector<16x128xf32> -> vector<16x128xf32>
    %c0_6 = arith.constant 0 : index
    %c0_7 = arith.constant 0 : index
    %7 = vector.load %arg6[%c0_6, %c0_7] : memref<1x128xf32, #tpu.memory_space<vmem>>, vector<1x128xf32>
    %cst_8 = arith.constant 0.000000e+00 : f32
    %8 = vector.broadcast %cst_8 : f32 to vector<1x128xf32>
    %9 = vector.extract_strided_slice %6 {offsets = [0, 0], sizes = [15, 128], strides = [1, 1]} : vector<16x128xf32> to vector<15x128xf32>
    %10 = tpu.concatenate %8, %9 in 0 : vector<1x128xf32>, vector<15x128xf32> -> vector<16x128xf32>
    %c0_9 = arith.constant 0 : index
    %c0_10 = arith.constant 0 : index
    %c0_11 = arith.constant 0 : index
    %11 = vector.load %arg5[%c0_9, %c0_10, %c0_11] : memref<3x128x128xbf16, #tpu.memory_space<vmem>>, vector<1x128x128xbf16>
    %12 = vector.shape_cast %11 : vector<1x128x128xbf16> to vector<128x128xbf16>
    %13 = arith.truncf %10 : vector<16x128xf32> to vector<16x128xbf16>
    %cst_12 = arith.constant dense<0.000000e+00> : vector<16x128xf32>
    %14 = tpu.matmul %13, %12, %cst_12 {dimension_numbers = #tpu.dot_dimension_numbers<[1], [0], [0], [1], [0, 0, 1, 1], [], []>} : vector<16x128xbf16>, vector<128x128xbf16>, vector<16x128xf32> -> vector<16x128xf32>
    %15 = vector.broadcast %7 : vector<1x128xf32> to vector<16x128xf32>
    %16 = arith.addf %15, %14 : vector<16x128xf32>
    %c1 = arith.constant 1 : index
    %c0_13 = arith.constant 0 : index
    %c0_14 = arith.constant 0 : index
    %17 = vector.load %arg5[%c1, %c0_13, %c0_14] : memref<3x128x128xbf16, #tpu.memory_space<vmem>>, vector<1x128x128xbf16>
    %18 = vector.shape_cast %17 : vector<1x128x128xbf16> to vector<128x128xbf16>
    %19 = arith.truncf %6 : vector<16x128xf32> to vector<16x128xbf16>
    %cst_15 = arith.constant dense<0.000000e+00> : vector<16x128xf32>
    %20 = tpu.matmul %19, %18, %cst_15 {dimension_numbers = #tpu.dot_dimension_numbers<[1], [0], [0], [1], [0, 0, 1, 1], [], []>} : vector<16x128xbf16>, vector<128x128xbf16>, vector<16x128xf32> -> vector<16x128xf32>
    %21 = arith.addf %16, %20 : vector<16x128xf32>
    %cst_16 = arith.constant 0.000000e+00 : f32
    %22 = vector.broadcast %cst_16 : f32 to vector<1x128xf32>
    %23 = vector.extract_strided_slice %6 {offsets = [1, 0], sizes = [15, 128], strides = [1, 1]} : vector<16x128xf32> to vector<15x128xf32>
    %24 = tpu.concatenate %23, %22 in 0 : vector<15x128xf32>, vector<1x128xf32> -> vector<16x128xf32>
    %c2 = arith.constant 2 : index
    %c0_17 = arith.constant 0 : index
    %c0_18 = arith.constant 0 : index
    %25 = vector.load %arg5[%c2, %c0_17, %c0_18] : memref<3x128x128xbf16, #tpu.memory_space<vmem>>, vector<1x128x128xbf16>
    %26 = vector.shape_cast %25 : vector<1x128x128xbf16> to vector<128x128xbf16>
    %27 = arith.truncf %24 : vector<16x128xf32> to vector<16x128xbf16>
    %cst_19 = arith.constant dense<0.000000e+00> : vector<16x128xf32>
    %28 = tpu.matmul %27, %26, %cst_19 {dimension_numbers = #tpu.dot_dimension_numbers<[1], [0], [0], [1], [0, 0, 1, 1], [], []>} : vector<16x128xbf16>, vector<128x128xbf16>, vector<16x128xf32> -> vector<16x128xf32>
    %29 = arith.addf %21, %28 : vector<16x128xf32>
    %c0_20 = arith.constant 0 : index
    %c0_21 = arith.constant 0 : index
    %30 = vector.load %arg7[%c0_20, %c0_21] : memref<128x128xbf16, #tpu.memory_space<vmem>>, vector<128x128xbf16>
    %31 = arith.truncf %29 : vector<16x128xf32> to vector<16x128xbf16>
    %cst_22 = arith.constant dense<0.000000e+00> : vector<16x128xf32>
    %32 = tpu.matmul %31, %30, %cst_22 {dimension_numbers = #tpu.dot_dimension_numbers<[1], [0], [0], [1], [0, 0, 1, 1], [], []>} : vector<16x128xbf16>, vector<128x128xbf16>, vector<16x128xf32> -> vector<16x128xf32>
    %c0_23 = arith.constant 0 : index
    %c0_24 = arith.constant 0 : index
    %33 = vector.load %arg8[%c0_23, %c0_24] : memref<1x128xf32, #tpu.memory_space<vmem>>, vector<1x128xf32>
    %34 = vector.broadcast %33 : vector<1x128xf32> to vector<16x128xf32>
    %35 = arith.addf %32, %34 : vector<16x128xf32>
    %c0_25 = arith.constant 0 : index
    %c0_26 = arith.constant 0 : index
    %36 = vector.load %arg2[%c0_25, %c0_26] : memref<16x128xf32, #tpu.memory_space<vmem>>, vector<16x128xf32>
    %c0_27 = arith.constant 0 : index
    %c0_28 = arith.constant 0 : index
    %37 = vector.load %arg9[%c0_27, %c0_28] : memref<128x128xbf16, #tpu.memory_space<vmem>>, vector<128x128xbf16>
    %38 = arith.truncf %36 : vector<16x128xf32> to vector<16x128xbf16>
    %cst_29 = arith.constant dense<0.000000e+00> : vector<16x128xf32>
    %39 = tpu.matmul %38, %37, %cst_29 {dimension_numbers = #tpu.dot_dimension_numbers<[1], [0], [0], [1], [0, 0, 1, 1], [], []>} : vector<16x128xbf16>, vector<128x128xbf16>, vector<16x128xf32> -> vector<16x128xf32>
    %c0_30 = arith.constant 0 : index
    %c0_31 = arith.constant 0 : index
    %40 = vector.load %arg10[%c0_30, %c0_31] : memref<1x128xf32, #tpu.memory_space<vmem>>, vector<1x128xf32>
    %41 = vector.broadcast %40 : vector<1x128xf32> to vector<16x128xf32>
    %42 = arith.addf %39, %41 : vector<16x128xf32>
    %43 = tpu.concatenate %35, %42 in 1 : vector<16x128xf32>, vector<16x128xf32> -> vector<16x256xf32>
    %c0_32 = arith.constant 0 : index
    %c0_33 = arith.constant 0 : index
    %44 = vector.load %arg12[%c0_32, %c0_33] : memref<1x128xf32, #tpu.memory_space<vmem>>, vector<1x128xf32>
    %cst_34 = arith.constant 0.000000e+00 : f32
    %45 = vector.broadcast %cst_34 : f32 to vector<1x256xf32>
    %46 = vector.extract_strided_slice %43 {offsets = [0, 0], sizes = [15, 256], strides = [1, 1]} : vector<16x256xf32> to vector<15x256xf32>
    %47 = tpu.concatenate %45, %46 in 0 : vector<1x256xf32>, vector<15x256xf32> -> vector<16x256xf32>
    %c0_35 = arith.constant 0 : index
    %c0_36 = arith.constant 0 : index
    %c0_37 = arith.constant 0 : index
    %48 = vector.load %arg11[%c0_35, %c0_36, %c0_37] : memref<3x256x128xbf16, #tpu.memory_space<vmem>>, vector<1x256x128xbf16>
    %49 = vector.shape_cast %48 : vector<1x256x128xbf16> to vector<256x128xbf16>
    %50 = arith.truncf %47 : vector<16x256xf32> to vector<16x256xbf16>
    %cst_38 = arith.constant dense<0.000000e+00> : vector<16x128xf32>
    %51 = tpu.matmul %50, %49, %cst_38 {dimension_numbers = #tpu.dot_dimension_numbers<[1], [0], [0], [1], [0, 0, 1, 1], [], []>} : vector<16x256xbf16>, vector<256x128xbf16>, vector<16x128xf32> -> vector<16x128xf32>
    %52 = vector.broadcast %44 : vector<1x128xf32> to vector<16x128xf32>
    %53 = arith.addf %52, %51 : vector<16x128xf32>
    %c1_39 = arith.constant 1 : index
    %c0_40 = arith.constant 0 : index
    %c0_41 = arith.constant 0 : index
    %54 = vector.load %arg11[%c1_39, %c0_40, %c0_41] : memref<3x256x128xbf16, #tpu.memory_space<vmem>>, vector<1x256x128xbf16>
    %55 = vector.shape_cast %54 : vector<1x256x128xbf16> to vector<256x128xbf16>
    %56 = arith.truncf %43 : vector<16x256xf32> to vector<16x256xbf16>
    %cst_42 = arith.constant dense<0.000000e+00> : vector<16x128xf32>
    %57 = tpu.matmul %56, %55, %cst_42 {dimension_numbers = #tpu.dot_dimension_numbers<[1], [0], [0], [1], [0, 0, 1, 1], [], []>} : vector<16x256xbf16>, vector<256x128xbf16>, vector<16x128xf32> -> vector<16x128xf32>
    %58 = arith.addf %53, %57 : vector<16x128xf32>
    %cst_43 = arith.constant 0.000000e+00 : f32
    %59 = vector.broadcast %cst_43 : f32 to vector<1x256xf32>
    %60 = vector.extract_strided_slice %43 {offsets = [1, 0], sizes = [15, 256], strides = [1, 1]} : vector<16x256xf32> to vector<15x256xf32>
    %61 = tpu.concatenate %60, %59 in 0 : vector<15x256xf32>, vector<1x256xf32> -> vector<16x256xf32>
    %c2_44 = arith.constant 2 : index
    %c0_45 = arith.constant 0 : index
    %c0_46 = arith.constant 0 : index
    %62 = vector.load %arg11[%c2_44, %c0_45, %c0_46] : memref<3x256x128xbf16, #tpu.memory_space<vmem>>, vector<1x256x128xbf16>
    %63 = vector.shape_cast %62 : vector<1x256x128xbf16> to vector<256x128xbf16>
    %64 = arith.truncf %61 : vector<16x256xf32> to vector<16x256xbf16>
    %cst_47 = arith.constant dense<0.000000e+00> : vector<16x128xf32>
    %65 = tpu.matmul %64, %63, %cst_47 {dimension_numbers = #tpu.dot_dimension_numbers<[1], [0], [0], [1], [0, 0, 1, 1], [], []>} : vector<16x256xbf16>, vector<256x128xbf16>, vector<16x128xf32> -> vector<16x128xf32>
    %66 = arith.addf %58, %65 : vector<16x128xf32>
    %c0_48 = arith.constant 0 : index
    %c0_49 = arith.constant 0 : index
    %67 = vector.load %arg13[%c0_48, %c0_49] : memref<16x128xf32, #tpu.memory_space<vmem>>, vector<16x128xf32>
    tpu.vector_store %arg13[%c0_48, %c0_49], %66 {strides = array<i32>} : memref<16x128xf32, #tpu.memory_space<vmem>>, vector<16x128xf32>,
    return
  }
  func.func @transform_0(%arg0: i32) -> (i32, i32) {
    %c0_i32 = arith.constant 0 : i32
    %c0_i32_0 = arith.constant 0 : i32
    return %arg0, %c0_i32 : i32, i32
  }
  func.func @transform_1(%arg0: i32) -> (i32, i32) {
    %c0_i32 = arith.constant 0 : i32
    %c0_i32_0 = arith.constant 0 : i32
    return %arg0, %c0_i32 : i32, i32
  }
  func.func @transform_2(%arg0: i32) -> (i32, i32) {
    %c0_i32 = arith.constant 0 : i32
    %c0_i32_0 = arith.constant 0 : i32
    %c0_i32_1 = arith.constant 0 : i32
    return %c0_i32, %c0_i32_0 : i32, i32
  }
  func.func @transform_3(%arg0: i32) -> (i32, i32) {
    %c0_i32 = arith.constant 0 : i32
    %c0_i32_0 = arith.constant 0 : i32
    %c0_i32_1 = arith.constant 0 : i32
    return %c0_i32, %c0_i32_0 : i32, i32
  }
  func.func @transform_4(%arg0: i32) -> (i32, i32, i32) {
    %c0_i32 = arith.constant 0 : i32
    %c0_i32_0 = arith.constant 0 : i32
    %c0_i32_1 = arith.constant 0 : i32
    %c0_i32_2 = arith.constant 0 : i32
    return %c0_i32, %c0_i32_0, %c0_i32_1 : i32, i32, i32
  }
  func.func @transform_5(%arg0: i32) -> (i32, i32) {
    %c0_i32 = arith.constant 0 : i32
    %c0_i32_0 = arith.constant 0 : i32
    %c0_i32_1 = arith.constant 0 : i32
    return %c0_i32, %c0_i32_0 : i32, i32
  }
  func.func @transform_6(%arg0: i32) -> (i32, i32) {
    %c0_i32 = arith.constant 0 : i32
    %c0_i32_0 = arith.constant 0 : i32
    %c0_i32_1 = arith.constant 0 : i32
    return %c0_i32, %c0_i32_0 : i32, i32
  }
  func.func @transform_7(%arg0: i32) -> (i32, i32) {
    %c0_i32 = arith.constant 0 : i32
    %c0_i32_0 = arith.constant 0 : i32
    %c0_i32_1 = arith.constant 0 : i32
    return %c0_i32, %c0_i32_0 : i32, i32
  }
  func.func @transform_8(%arg0: i32) -> (i32, i32) {
    %c0_i32 = arith.constant 0 : i32
    %c0_i32_0 = arith.constant 0 : i32
    %c0_i32_1 = arith.constant 0 : i32
    return %c0_i32, %c0_i32_0 : i32, i32
  }
  func.func @transform_9(%arg0: i32) -> (i32, i32) {
    %c0_i32 = arith.constant 0 : i32
    %c0_i32_0 = arith.constant 0 : i32
    %c0_i32_1 = arith.constant 0 : i32
    return %c0_i32, %c0_i32_0 : i32, i32
  }
  func.func @transform_10(%arg0: i32) -> (i32, i32, i32) {
    %c0_i32 = arith.constant 0 : i32
    %c0_i32_0 = arith.constant 0 : i32
    %c0_i32_1 = arith.constant 0 : i32
    %c0_i32_2 = arith.constant 0 : i32
    return %c0_i32, %c0_i32_0, %c0_i32_1 : i32, i32, i32
  }
  func.func @transform_11(%arg0: i32) -> (i32, i32) {
    %c0_i32 = arith.constant 0 : i32
    %c0_i32_0 = arith.constant 0 : i32
    %c0_i32_1 = arith.constant 0 : i32
    return %c0_i32, %c0_i32_0 : i32, i32
  }
  func.func @transform_12(%arg0: i32) -> (i32, i32) {
    %c0_i32 = arith.constant 0 : i32
    %c0_i32_0 = arith.constant 0 : i32
    return %arg0, %c0_i32 : i32, i32
  }
}

</mosaic_0001>

<llo_original>
// kernel: tile.23
$region0: #{tile.23}
  #allocation0 [shape = 's32[1]{0}', space=sflag, size = 0x4, scoped, tag = 'scoped memory for tile.23']
  %s0 = inlined_call_operand.vmem [shape: f32[8], index: 0, kind: input, shape index: {}]
  %s1 = inlined_call_operand.vmem [shape: f32[16,8], index: 1, kind: output, shape index: {}]
  // Predicated region
  $region2: #{tile.23} parent=0 // pred_check
    _
  $region3: #{tile.23} parent=0 // pred_check_branch
    %3 = sbr.rel (0) target = $region5
  $region4: #{tile.23} parent=0 // pred_region
    _
  $region5: #{tile.23} parent=0 // pred_fallthru
    _
  %v4 = vld [vmem:[%s0] ss:$0 sm:$0xff]
  %5 = vst [vmem:[%s1] sm:$0xff] %v4
  %s6 = scalar_lea.vmem %s1, 8
  %7 = vst [vmem:[%s6] sm:$0xff] %v4

// kernel: tile.24
$region0: #{tile.24}
  %s0 = inlined_call_operand.vmem [shape: f32[16,8], index: 0, kind: input, shape index: {}]
  %s1 = inlined_call_operand.vmem [shape: f32[1,128], index: 1, kind: output, shape index: {}]
  $region1: #{tile.24} parent=0
    #allocation0 [shape = 'u8[4096]{0}', space=vmem, size = 0x1000, scoped, tag = 'scoped mem for output reshape']
    %v2 = vld [vmem:[%s0] sm:$0x1]
    %vm3 = vcmask 64512
    %4 = vst.msk [vmem:[#allocation0] sm:$0x1] %vm3, %v2
    %s5 = scalar_lea.vmem %s0, 15
    %v6 = vld [vmem:[%s5] sm:$0x1]
    %7 = vrot.lane.b32.xlu0 %v6, 120
    %v8 = vpop.permute.xlu0 %7
    %vm9 = vcmask 1048512
    %10 = vst.msk [vmem:[#allocation0] sm:$0x1] %vm9, %v8
    %s11 = scalar_lea.vmem %s0, 14
    %v12 = vld [vmem:[%s11] sm:$0x1]
    %13 = vrot.lane.b32.xlu0 %v12, 112
    %v14 = vpop.permute.xlu0 %13
    %vm15 = vcmask 982912
    %16 = vst.msk [vmem:[#allocation0] sm:$0x1] %vm15, %v14
    %s17 = scalar_lea.vmem %s0, 13
    %v18 = vld [vmem:[%s17] sm:$0x1]
    %19 = vrot.lane.b32.xlu0 %v18, 104
    %v20 = vpop.permute.xlu0 %19
    %vm21 = vcmask 917312
    %22 = vst.msk [vmem:[#allocation0] sm:$0x1] %vm21, %v20
    %s23 = scalar_lea.vmem %s0, 12
    %v24 = vld [vmem:[%s23] sm:$0x1]
    %25 = vrot.lane.b32.xlu0 %v24, 96
    %v26 = vpop.permute.xlu0 %25
    %vm27 = vcmask 851712
    %28 = vst.msk [vmem:[#allocation0] sm:$0x1] %vm27, %v26
    %s29 = scalar_lea.vmem %s0, 11
    %v30 = vld [vmem:[%s29] sm:$0x1]
    %31 = vrot.lane.b32.xlu0 %v30, 88
    %v32 = vpop.permute.xlu0 %31
    %vm33 = vcmask 786112
    %34 = vst.msk [vmem:[#allocation0] sm:$0x1] %vm33, %v32
    %s35 = scalar_lea.vmem %s0, 10
    %v36 = vld [vmem:[%s35] sm:$0x1]
    %37 = vrot.lane.b32.xlu0 %v36, 80
    %v38 = vpop.permute.xlu0 %37
    %vm39 = vcmask 720512
    %40 = vst.msk [vmem:[#allocation0] sm:$0x1] %vm39, %v38
    %s41 = scalar_lea.vmem %s0, 9
    %v42 = vld [vmem:[%s41] sm:$0x1]
    %43 = vrot.lane.b32.xlu0 %v42, 72
    %v44 = vpop.permute.xlu0 %43
    %vm45 = vcmask 654912
    %46 = vst.msk [vmem:[#allocation0] sm:$0x1] %vm45, %v44
    %s47 = scalar_lea.vmem %s0, 8
    %v48 = vld [vmem:[%s47] sm:$0x1]
    %49 = vrot.lane.b32.xlu0 %v48, 64
    %v50 = vpop.permute.xlu0 %49
    %vm51 = vcmask 589312
    %52 = vst.msk [vmem:[#allocation0] sm:$0x1] %vm51, %v50
    %s53 = scalar_lea.vmem %s0, 7
    %v54 = vld [vmem:[%s53] sm:$0x1]
    %55 = vrot.lane.b32.xlu0 %v54, 56
    %v56 = vpop.permute.xlu0 %55
    %vm57 = vcmask 523712
    %58 = vst.msk [vmem:[#allocation0] sm:$0x1] %vm57, %v56
    %s59 = scalar_lea.vmem %s0, 6
    %v60 = vld [vmem:[%s59] sm:$0x1]
    %61 = vrot.lane.b32.xlu0 %v60, 48
    %v62 = vpop.permute.xlu0 %61
    %vm63 = vcmask 458112
    %64 = vst.msk [vmem:[#allocation0] sm:$0x1] %vm63, %v62
    %s65 = scalar_lea.vmem %s0, 5
    %v66 = vld [vmem:[%s65] sm:$0x1]
    %67 = vrot.lane.b32.xlu0 %v66, 40
    %v68 = vpop.permute.xlu0 %67
    %vm69 = vcmask 392512
    %70 = vst.msk [vmem:[#allocation0] sm:$0x1] %vm69, %v68
    %s71 = scalar_lea.vmem %s0, 4
    %v72 = vld [vmem:[%s71] sm:$0x1]
    %73 = vrot.lane.b32.xlu0 %v72, 32
    %v74 = vpop.permute.xlu0 %73
    %vm75 = vcmask 326912
    %76 = vst.msk [vmem:[#allocation0] sm:$0x1] %vm75, %v74
    %s77 = scalar_lea.vmem %s0, 3
    %v78 = vld [vmem:[%s77] sm:$0x1]
    %79 = vrot.lane.b32.xlu0 %v78, 24
    %v80 = vpop.permute.xlu0 %79
    %vm81 = vcmask 261312
    %82 = vst.msk [vmem:[#allocation0] sm:$0x1] %vm81, %v80
    %s83 = scalar_lea.vmem %s0, 2
    %v84 = vld [vmem:[%s83] sm:$0x1]
    %85 = vrot.lane.b32.xlu0 %v84, 16
    %v86 = vpop.permute.xlu0 %85
    %vm87 = vcmask 195712
    %88 = vst.msk [vmem:[#allocation0] sm:$0x1] %vm87, %v86
    %s89 = scalar_lea.vmem %s0, 1
    %v90 = vld [vmem:[%s89] sm:$0x1]
    %91 = vrot.lane.b32.xlu0 %v90, 8
    %v92 = vpop.permute.xlu0 %91
    %vm93 = vcmask 130112
    %94 = vst.msk [vmem:[#allocation0] sm:$0x1] %vm93, %v92
    %s96 = sshll.u32 1, 1
    %s97 = ssub.s32 %s96, 1
    %v99 = vld [vmem:[#allocation0] sm:%s97]
    %s100 = sshll.u32 1, 1
    %s101 = ssub.s32 %s100, 1
    %102 = vst [vmem:[%s1] sm:%s101] %v99

// kernel: decoder_block_forward.1
$region0: #{decoder_block_forward.1}
  #allocation0 [shape = 'u32[]', space=smem, size = 0x4, offset = 0x4, fixed_abs, tag = 'smem constant byte address 0x4 - core index']
  #allocation1 [shape = 'u32[144,128]{1,0:T(1,128)}', space=vmem, size = 0x12000, scoped, tag = 'internal scratch']
  %s0 = inlined_call_operand.vmem [shape: f32[16,64], index: 0, kind: input, shape index: {}]
  %s1 = inlined_call_operand.vmem [shape: f32[32,128], index: 1, kind: input, shape index: {}]
  %s2 = inlined_call_operand.vmem [shape: bf16[16,8], index: 2, kind: input, shape index: {}]
  %s3 = inlined_call_operand.vmem [shape: bf16[64,128], index: 3, kind: input, shape index: {}]
  %s4 = inlined_call_operand.vmem [shape: bf16[3,128,128], index: 4, kind: input, shape index: {}]
  %s5 = inlined_call_operand.vmem [shape: f32[1,128], index: 5, kind: input, shape index: {}]
  %s6 = inlined_call_operand.vmem [shape: bf16[128,128], index: 6, kind: input, shape index: {}]
  %s7 = inlined_call_operand.vmem [shape: f32[1,128], index: 7, kind: input, shape index: {}]
  %s8 = inlined_call_operand.vmem [shape: bf16[128,128], index: 8, kind: input, shape index: {}]
  %s9 = inlined_call_operand.vmem [shape: f32[1,128], index: 9, kind: input, shape index: {}]
  %s10 = inlined_call_operand.vmem [shape: bf16[3,256,128], index: 10, kind: input, shape index: {}]
  %s11 = inlined_call_operand.vmem [shape: f32[1,128], index: 11, kind: input, shape index: {}]
  %s12 = inlined_call_operand.vmem [shape: f32[32,128], index: 12, kind: output, shape index: {}]
  %s13 = sld [smem:[#allocation0]]
  $region81: #{decoder_block_forward.1} parent=0
    _
  %s15 = ssub.s32 1, %s13
  %s16 = scalar_select 0, %s15, %s13
  loop: start=0, step=1, limit=4
  $region2: #{decoder_block_forward.1} parent=0 // loop_pre_header
    _
  $region3: #{decoder_block_forward.1} parent=0 // loop_header
    %s18 = sphi 0, %s22
    %p19 = scmp.ge.s32.totalorder %s18, 4
    %s28 = sphi 0, %s30
    %s31 = sphi 0, %s28
    %s32 = sphi 0, %s31
    %s48 = sphi 0, %s32
    %s54 = sphi 0, %s56
    %s57 = sphi 0, %s54
    %s58 = sphi 0, %s57
    %s74 = sphi 0, %s58
    %s78 = sphi 0, %s78
    %s80 = sphi 0, %s78
    %s81 = sphi 0, %s80
    %s95 = sphi 0, %s81
    %s99 = sphi 0, %s99
    %s101 = sphi 0, %s99
    %s102 = sphi 0, %s101
    %s116 = sphi 0, %s102
    %s120 = sphi 0, %s120
    %s122 = sphi 0, %s120
    %s123 = sphi 0, %s122
    %s137 = sphi 0, %s123
    %s141 = sphi 0, %s141
    %s143 = sphi 0, %s141
    %s144 = sphi 0, %s143
    %s158 = sphi 0, %s144
    %s162 = sphi 0, %s162
    %s164 = sphi 0, %s162
    %s165 = sphi 0, %s164
    %s179 = sphi 0, %s165
    %s183 = sphi 0, %s183
    %s185 = sphi 0, %s183
    %s186 = sphi 0, %s185
    %s200 = sphi 0, %s186
    %s204 = sphi 0, %s204
    %s206 = sphi 0, %s204
    %s207 = sphi 0, %s206
    %s221 = sphi 0, %s207
    %s225 = sphi 0, %s225
    %s227 = sphi 0, %s225
    %s228 = sphi 0, %s227
    %s242 = sphi 0, %s228
    %s246 = sphi 0, %s246
    %s248 = sphi 0, %s246
    %s249 = sphi 0, %s248
    %s263 = sphi 0, %s249
    %s267 = sphi 0, %s267
    %s269 = sphi 0, %s267
    %s270 = sphi 0, %s269
    %s284 = sphi 0, %s270
    %s290 = sphi 0, %s292
    %s293 = sphi 0, %s290
    %s294 = sphi 0, %s293
    %s310 = sphi 0, %s294
  $region4: #{decoder_block_forward.1} parent=0 // loop_header_branch
    %21 = sbr.rel (%p19) target = $region8
  $region5: #{decoder_block_forward.1} parent=0 // loop_body
    %s23 = ssub.s32 %s18, 1
    %s24 = ssub.s32 %s18, 2
    %s25 = sadd.s32 %s18, 1
    %s26 = ssub.s32 %s18, %s25
    %p27 = scmp.eq.s32.totalorder %s26, 0
    %s29 = sadd.s32 %s28, 1
    %s30 = scalar_select %p27, %s28, %s29
    %p33 = pneg %p27
    %p34 = scmp.eq.s32.totalorder %s18, 1
    %p35 = por %p33, %p34
    %p36 = scmp.ne.s32.totalorder %s28, %s31
    %p37 = scmp.eq.s32.totalorder %s18, 0
    %p38 = por %p36, %p37
    %p39 = scmp.ne.s32.totalorder %s28, %s31
    %p40 = scmp.eq.s32.totalorder %s23, 1
    %p41 = por %p39, %p40
    %p42 = scmp.ne.s32.totalorder %s31, %s32
    %p43 = scmp.eq.s32.totalorder %s23, 0
    %p44 = por %p42, %p43
    %p45 = scmp.ne.s32.totalorder %s31, %s32
    %p46 = scmp.eq.s32.totalorder %s24, 1
    %p47 = por %p45, %p46
    %p49 = scmp.ne.s32.totalorder %s32, %s48
    %p50 = scmp.eq.s32.totalorder %s24, 0
    %p51 = por %p49, %p50
    %s52 = ssub.s32 %s18, %s25
    %p53 = scmp.eq.s32.totalorder %s52, 0
    %s55 = sadd.s32 %s54, 1
    %s56 = scalar_select %p53, %s54, %s55
    %p59 = pneg %p53
    %p60 = scmp.eq.s32.totalorder %s18, 1
    %p61 = por %p59, %p60
    %p62 = scmp.ne.s32.totalorder %s54, %s57
    %p63 = scmp.eq.s32.totalorder %s18, 0
    %p64 = por %p62, %p63
    %p65 = scmp.ne.s32.totalorder %s54, %s57
    %p66 = scmp.eq.s32.totalorder %s23, 1
    %p67 = por %p65, %p66
    %p68 = scmp.ne.s32.totalorder %s57, %s58
    %p69 = scmp.eq.s32.totalorder %s23, 0
    %p70 = por %p68, %p69
    %p71 = scmp.ne.s32.totalorder %s57, %s58
    %p72 = scmp.eq.s32.totalorder %s24, 1
    %p73 = por %p71, %p72
    %p75 = scmp.ne.s32.totalorder %s58, %s74
    %p76 = scmp.eq.s32.totalorder %s24, 0
    %p77 = por %p75, %p76
    %s79 = sadd.s32 %s78, 1
    %p82 = scmp.eq.s32.totalorder %s18, 1
    %p83 = scmp.ne.s32.totalorder %s78, %s80
    %p84 = scmp.eq.s32.totalorder %s18, 0
    %p85 = por %p83, %p84
    %p86 = scmp.ne.s32.totalorder %s78, %s80
    %p87 = scmp.eq.s32.totalorder %s23, 1
    %p88 = por %p86, %p87
    %p89 = scmp.ne.s32.totalorder %s80, %s81
    %p90 = scmp.eq.s32.totalorder %s23, 0
    %p91 = por %p89, %p90
    %p92 = scmp.ne.s32.totalorder %s80, %s81
    %p93 = scmp.eq.s32.totalorder %s24, 1
    %p94 = por %p92, %p93
    %p96 = scmp.ne.s32.totalorder %s81, %s95
    %p97 = scmp.eq.s32.totalorder %s24, 0
    %p98 = por %p96, %p97
    %s100 = sadd.s32 %s99, 1
    %p103 = scmp.eq.s32.totalorder %s18, 1
    %p104 = scmp.ne.s32.totalorder %s99, %s101
    %p105 = scmp.eq.s32.totalorder %s18, 0
    %p106 = por %p104, %p105
    %p107 = scmp.ne.s32.totalorder %s99, %s101
    %p108 = scmp.eq.s32.totalorder %s23, 1
    %p109 = por %p107, %p108
    %p110 = scmp.ne.s32.totalorder %s101, %s102
    %p111 = scmp.eq.s32.totalorder %s23, 0
    %p112 = por %p110, %p111
    %p113 = scmp.ne.s32.totalorder %s101, %s102
    %p114 = scmp.eq.s32.totalorder %s24, 1
    %p115 = por %p113, %p114
    %p117 = scmp.ne.s32.totalorder %s102, %s116
    %p118 = scmp.eq.s32.totalorder %s24, 0
    %p119 = por %p117, %p118
    %s121 = sadd.s32 %s120, 1
    %p124 = scmp.eq.s32.totalorder %s18, 1
    %p125 = scmp.ne.s32.totalorder %s120, %s122
    %p126 = scmp.eq.s32.totalorder %s18, 0
    %p127 = por %p125, %p126
    %p128 = scmp.ne.s32.totalorder %s120, %s122
    %p129 = scmp.eq.s32.totalorder %s23, 1
    %p130 = por %p128, %p129
    %p131 = scmp.ne.s32.totalorder %s122, %s123
    %p132 = scmp.eq.s32.totalorder %s23, 0
    %p133 = por %p131, %p132
    %p134 = scmp.ne.s32.totalorder %s122, %s123
    %p135 = scmp.eq.s32.totalorder %s24, 1
    %p136 = por %p134, %p135
    %p138 = scmp.ne.s32.totalorder %s123, %s137
    %p139 = scmp.eq.s32.totalorder %s24, 0
    %p140 = por %p138, %p139
    %s142 = sadd.s32 %s141, 1
    %p145 = scmp.eq.s32.totalorder %s18, 1
    %p146 = scmp.ne.s32.totalorder %s141, %s143
    %p147 = scmp.eq.s32.totalorder %s18, 0
    %p148 = por %p146, %p147
    %p149 = scmp.ne.s32.totalorder %s141, %s143
    %p150 = scmp.eq.s32.totalorder %s23, 1
    %p151 = por %p149, %p150
    %p152 = scmp.ne.s32.totalorder %s143, %s144
    %p153 = scmp.eq.s32.totalorder %s23, 0
    %p154 = por %p152, %p153
    %p155 = scmp.ne.s32.totalorder %s143, %s144
    %p156 = scmp.eq.s32.totalorder %s24, 1
    %p157 = por %p155, %p156
    %p159 = scmp.ne.s32.totalorder %s144, %s158
    %p160 = scmp.eq.s32.totalorder %s24, 0
    %p161 = por %p159, %p160
    %s163 = sadd.s32 %s162, 1
    %p166 = scmp.eq.s32.totalorder %s18, 1
    %p167 = scmp.ne.s32.totalorder %s162, %s164
    %p168 = scmp.eq.s32.totalorder %s18, 0
    %p169 = por %p167, %p168
    %p170 = scmp.ne.s32.totalorder %s162, %s164
    %p171 = scmp.eq.s32.totalorder %s23, 1
    %p172 = por %p170, %p171
    %p173 = scmp.ne.s32.totalorder %s164, %s165
    %p174 = scmp.eq.s32.totalorder %s23, 0
    %p175 = por %p173, %p174
    %p176 = scmp.ne.s32.totalorder %s164, %s165
    %p177 = scmp.eq.s32.totalorder %s24, 1
    %p178 = por %p176, %p177
    %p180 = scmp.ne.s32.totalorder %s165, %s179
    %p181 = scmp.eq.s32.totalorder %s24, 0
    %p182 = por %p180, %p181
    %s184 = sadd.s32 %s183, 1
    %p187 = scmp.eq.s32.totalorder %s18, 1
    %p188 = scmp.ne.s32.totalorder %s183, %s185
    %p189 = scmp.eq.s32.totalorder %s18, 0
    %p190 = por %p188, %p189
    %p191 = scmp.ne.s32.totalorder %s183, %s185
    %p192 = scmp.eq.s32.totalorder %s23, 1
    %p193 = por %p191, %p192
    %p194 = scmp.ne.s32.totalorder %s185, %s186
    %p195 = scmp.eq.s32.totalorder %s23, 0
    %p196 = por %p194, %p195
    %p197 = scmp.ne.s32.totalorder %s185, %s186
    %p198 = scmp.eq.s32.totalorder %s24, 1
    %p199 = por %p197, %p198
    %p201 = scmp.ne.s32.totalorder %s186, %s200
    %p202 = scmp.eq.s32.totalorder %s24, 0
    %p203 = por %p201, %p202
    %s205 = sadd.s32 %s204, 1
    %p208 = scmp.eq.s32.totalorder %s18, 1
    %p209 = scmp.ne.s32.totalorder %s204, %s206
    %p210 = scmp.eq.s32.totalorder %s18, 0
    %p211 = por %p209, %p210
    %p212 = scmp.ne.s32.totalorder %s204, %s206
    %p213 = scmp.eq.s32.totalorder %s23, 1
    %p214 = por %p212, %p213
    %p215 = scmp.ne.s32.totalorder %s206, %s207
    %p216 = scmp.eq.s32.totalorder %s23, 0
    %p217 = por %p215, %p216
    %p218 = scmp.ne.s32.totalorder %s206, %s207
    %p219 = scmp.eq.s32.totalorder %s24, 1
    %p220 = por %p218, %p219
    %p222 = scmp.ne.s32.totalorder %s207, %s221
    %p223 = scmp.eq.s32.totalorder %s24, 0
    %p224 = por %p222, %p223
    %s226 = sadd.s32 %s225, 1
    %p229 = scmp.eq.s32.totalorder %s18, 1
    %p230 = scmp.ne.s32.totalorder %s225, %s227
    %p231 = scmp.eq.s32.totalorder %s18, 0
    %p232 = por %p230, %p231
    %p233 = scmp.ne.s32.totalorder %s225, %s227
    %p234 = scmp.eq.s32.totalorder %s23, 1
    %p235 = por %p233, %p234
    %p236 = scmp.ne.s32.totalorder %s227, %s228
    %p237 = scmp.eq.s32.totalorder %s23, 0
    %p238 = por %p236, %p237
    %p239 = scmp.ne.s32.totalorder %s227, %s228
    %p240 = scmp.eq.s32.totalorder %s24, 1
    %p241 = por %p239, %p240
    %p243 = scmp.ne.s32.totalorder %s228, %s242
    %p244 = scmp.eq.s32.totalorder %s24, 0
    %p245 = por %p243, %p244
    %s247 = sadd.s32 %s246, 1
    %p250 = scmp.eq.s32.totalorder %s18, 1
    %p251 = scmp.ne.s32.totalorder %s246, %s248
    %p252 = scmp.eq.s32.totalorder %s18, 0
    %p253 = por %p251, %p252
    %p254 = scmp.ne.s32.totalorder %s246, %s248
    %p255 = scmp.eq.s32.totalorder %s23, 1
    %p256 = por %p254, %p255
    %p257 = scmp.ne.s32.totalorder %s248, %s249
    %p258 = scmp.eq.s32.totalorder %s23, 0
    %p259 = por %p257, %p258
    %p260 = scmp.ne.s32.totalorder %s248, %s249
    %p261 = scmp.eq.s32.totalorder %s24, 1
    %p262 = por %p260, %p261
    %p264 = scmp.ne.s32.totalorder %s249, %s263
    %p265 = scmp.eq.s32.totalorder %s24, 0
    %p266 = por %p264, %p265
    %s268 = sadd.s32 %s267, 1
    %p271 = scmp.eq.s32.totalorder %s18, 1
    %p272 = scmp.ne.s32.totalorder %s267, %s269
    %p273 = scmp.eq.s32.totalorder %s18, 0
    %p274 = por %p272, %p273
    %p275 = scmp.ne.s32.totalorder %s267, %s269
    %p276 = scmp.eq.s32.totalorder %s23, 1
    %p277 = por %p275, %p276
    %p278 = scmp.ne.s32.totalorder %s269, %s270
    %p279 = scmp.eq.s32.totalorder %s23, 0
    %p280 = por %p278, %p279
    %p281 = scmp.ne.s32.totalorder %s269, %s270
    %p282 = scmp.eq.s32.totalorder %s24, 1
    %p283 = por %p281, %p282
    %p285 = scmp.ne.s32.totalorder %s270, %s284
    %p286 = scmp.eq.s32.totalorder %s24, 0
    %p287 = por %p285, %p286
    %s288 = ssub.s32 %s18, %s25
    %p289 = scmp.eq.s32.totalorder %s288, 0
    %s291 = sadd.s32 %s290, 1
    %s292 = scalar_select %p289, %s290, %s291
    %p295 = pneg %p289
    %p296 = scmp.eq.s32.totalorder %s18, 1
    %p297 = por %p295, %p296
    %p298 = scmp.ne.s32.totalorder %s290, %s293
    %p299 = scmp.eq.s32.totalorder %s18, 0
    %p300 = por %p298, %p299
    %p301 = scmp.ne.s32.totalorder %s290, %s293
    %p302 = scmp.eq.s32.totalorder %s23, 1
    %p303 = por %p301, %p302
    %p304 = scmp.ne.s32.totalorder %s293, %s294
    %p305 = scmp.eq.s32.totalorder %s23, 0
    %p306 = por %p304, %p305
    %p307 = scmp.ne.s32.totalorder %s293, %s294
    %p308 = scmp.eq.s32.totalorder %s24, 1
    %p309 = por %p307, %p308
    %p311 = scmp.ne.s32.totalorder %s294, %s310
    %p312 = scmp.eq.s32.totalorder %s24, 0
    %p313 = por %p311, %p312
    %p314 = scmp.le.s32.totalorder 1, %s18
    %p315 = scmp.lt.s32.totalorder %s18, 3
    %p316 = pnand %p314, %p315
    %p317 = pneg %p316
    // Predicated region
    $region9: #{decoder_block_forward.1} parent=5 // pred_check
      _
    $region10: #{decoder_block_forward.1} parent=5 // pred_check_branch
      %319 = sbr.rel (%p316) target = $region12
    $region11: #{decoder_block_forward.1} parent=5 // pred_region
      %s320 = ssub.s32 %s18, 1
      // Predicated region
      $region13: #{decoder_block_forward.1} parent=11 // pred_check
        %p321 = pneg %p91
      $region14: #{decoder_block_forward.1} parent=11 // pred_check_branch
        %323 = sbr.rel (%p321) target = $region16
      $region15: #{decoder_block_forward.1} parent=11 // pred_region
        _
      $region16: #{decoder_block_forward.1} parent=11 // pred_fallthru
        _
      // Predicated region
      $region17: #{decoder_block_forward.1} parent=11 // pred_check
        %p324 = pneg %p112
      $region18: #{decoder_block_forward.1} parent=11 // pred_check_branch
        %326 = sbr.rel (%p324) target = $region20
      $region19: #{decoder_block_forward.1} parent=11 // pred_region
        _
      $region20: #{decoder_block_forward.1} parent=11 // pred_fallthru
        _
      // Predicated region
      $region21: #{decoder_block_forward.1} parent=11 // pred_check
        %p327 = pneg %p133
      $region22: #{decoder_block_forward.1} parent=11 // pred_check_branch
        %329 = sbr.rel (%p327) target = $region24
      $region23: #{decoder_block_forward.1} parent=11 // pred_region
        _
      $region24: #{decoder_block_forward.1} parent=11 // pred_fallthru
        _
      // Predicated region
      $region25: #{decoder_block_forward.1} parent=11 // pred_check
        %p330 = pneg %p154
      $region26: #{decoder_block_forward.1} parent=11 // pred_check_branch
        %332 = sbr.rel (%p330) target = $region28
      $region27: #{decoder_block_forward.1} parent=11 // pred_region
        _
      $region28: #{decoder_block_forward.1} parent=11 // pred_fallthru
        _
      // Predicated region
      $region29: #{decoder_block_forward.1} parent=11 // pred_check
        %p333 = pneg %p175
      $region30: #{decoder_block_forward.1} parent=11 // pred_check_branch
        %335 = sbr.rel (%p333) target = $region32
      $region31: #{decoder_block_forward.1} parent=11 // pred_region
        _
      $region32: #{decoder_block_forward.1} parent=11 // pred_fallthru
        _
      // Predicated region
      $region33: #{decoder_block_forward.1} parent=11 // pred_check
        %p336 = pneg %p196
      $region34: #{decoder_block_forward.1} parent=11 // pred_check_branch
        %338 = sbr.rel (%p336) target = $region36
      $region35: #{decoder_block_forward.1} parent=11 // pred_region
        _
      $region36: #{decoder_block_forward.1} parent=11 // pred_fallthru
        _
      // Predicated region
      $region37: #{decoder_block_forward.1} parent=11 // pred_check
        %p339 = pneg %p217
      $region38: #{decoder_block_forward.1} parent=11 // pred_check_branch
        %341 = sbr.rel (%p339) target = $region40
      $region39: #{decoder_block_forward.1} parent=11 // pred_region
        _
      $region40: #{decoder_block_forward.1} parent=11 // pred_fallthru
        _
      // Predicated region
      $region41: #{decoder_block_forward.1} parent=11 // pred_check
        %p342 = pneg %p238
      $region42: #{decoder_block_forward.1} parent=11 // pred_check_branch
        %344 = sbr.rel (%p342) target = $region44
      $region43: #{decoder_block_forward.1} parent=11 // pred_region
        _
      $region44: #{decoder_block_forward.1} parent=11 // pred_fallthru
        _
      // Predicated region
      $region45: #{decoder_block_forward.1} parent=11 // pred_check
        %p345 = pneg %p259
      $region46: #{decoder_block_forward.1} parent=11 // pred_check_branch
        %347 = sbr.rel (%p345) target = $region48
      $region47: #{decoder_block_forward.1} parent=11 // pred_region
        _
      $region48: #{decoder_block_forward.1} parent=11 // pred_fallthru
        _
      // Predicated region
      $region49: #{decoder_block_forward.1} parent=11 // pred_check
        %p348 = pneg %p280
      $region50: #{decoder_block_forward.1} parent=11 // pred_check_branch
        %350 = sbr.rel (%p348) target = $region52
      $region51: #{decoder_block_forward.1} parent=11 // pred_region
        _
      $region52: #{decoder_block_forward.1} parent=11 // pred_fallthru
        _
    $region12: #{decoder_block_forward.1} parent=5 // pred_fallthru
      _
    %p351 = scmp.lt.s32.totalorder %s18, 2
    // Predicated region
    $region53: #{decoder_block_forward.1} parent=5 // pred_check
      %p352 = pneg %p351
    $region54: #{decoder_block_forward.1} parent=5 // pred_check_branch
      %354 = sbr.rel (%p352) target = $region56
    $region55: #{decoder_block_forward.1} parent=5 // pred_region
      // Predicated region
      $region57: #{decoder_block_forward.1} parent=55 // pred_check
        %p355 = pneg %p38
      $region58: #{decoder_block_forward.1} parent=55 // pred_check_branch
        %357 = sbr.rel (%p355) target = $region60
      $region59: #{decoder_block_forward.1} parent=55 // pred_region
        %p358 = scmp.lt.s32.totalorder %s18, 1
        %s359 = scalar_select %p358, %s18, 1
        %s360 = smul.addr %s359, 8
        %s361 = scalar_lea.vmem %s0, %s360
      $region60: #{decoder_block_forward.1} parent=55 // pred_fallthru
        _
      // Predicated region
      $region61: #{decoder_block_forward.1} parent=55 // pred_check
        %p362 = pneg %p64
      $region62: #{decoder_block_forward.1} parent=55 // pred_check_branch
        %364 = sbr.rel (%p362) target = $region64
      $region63: #{decoder_block_forward.1} parent=55 // pred_region
        %s365 = smul.u32 2, %s18
        %p366 = scmp.lt.s32.totalorder %s365, 3
        %s367 = scalar_select %p366, %s365, 3
        %s368 = smul.addr %s367, 8
        %s369 = scalar_lea.vmem %s1, %s368
        %s370 = smul.u32 2, %s18
      $region64: #{decoder_block_forward.1} parent=55 // pred_fallthru
        _
    $region56: #{decoder_block_forward.1} parent=5 // pred_fallthru
      _
    %p371 = scmp.le.s32.totalorder 1, %s18
    %p372 = scmp.lt.s32.totalorder %s18, 3
    %p373 = pnand %p371, %p372
    %p374 = pneg %p373
    // Predicated region
    $region65: #{decoder_block_forward.1} parent=5 // pred_check
      _
    $region66: #{decoder_block_forward.1} parent=5 // pred_check_branch
      %376 = sbr.rel (%p373) target = $region68
    $region67: #{decoder_block_forward.1} parent=5 // pred_region
      %s377 = ssub.s32 %s18, 1
      %p378 = scmp.lt.s32.totalorder %s23, 1
      %s379 = scalar_select %p378, %s23, 1
      %s380 = smul.addr %s379, 8
      %s381 = scalar_lea.vmem %s0, %s380
      %p382 = pneg %p44
      %p383 = pneg %p41
      %s384 = smul.u32 2, %s23
      %p385 = scmp.lt.s32.totalorder %s384, 3
      %s386 = scalar_select %p385, %s384, 3
      %s387 = smul.addr %s386, 8
      %s388 = scalar_lea.vmem %s1, %s387
      %p389 = pneg %p70
      %p390 = pneg %p67
      %p391 = pneg %p91
      %p392 = pneg %p88
      %p393 = pneg %p112
      %p394 = pneg %p109
      %p395 = pneg %p133
      %p396 = pneg %p130
      %p397 = pneg %p154
      %p398 = pneg %p151
      %p399 = pneg %p175
      %p400 = pneg %p172
      %p401 = pneg %p196
      %p402 = pneg %p193
      %p403 = pneg %p217
      %p404 = pneg %p214
      %p405 = pneg %p238
      %p406 = pneg %p235
      %p407 = pneg %p259
      %p408 = pneg %p256
      %p409 = pneg %p280
      %p410 = pneg %p277
      %p411 = pneg %p306
      %p412 = pneg %p303
      %s413 = smul.u32 2, %s23
      %p414 = scmp.lt.s32.totalorder %s413, 3
      %s415 = scalar_select %p414, %s413, 3
      %s416 = smul.addr %s415, 8
      %s417 = scalar_lea.vmem %s12, %s416
      %p418 = scmp.lt.s32.totalorder %s23, 1
      %s419 = scalar_select %p418, %s23, 1
      %s420 = smul.addr %s419, 8
      %s421 = scalar_lea.vmem %s0, %s420
      %s422 = smul.u32 2, %s23
      %p423 = scmp.lt.s32.totalorder %s422, 3
      %s424 = scalar_select %p423, %s422, 3
      %s425 = smul.addr %s424, 8
      %s426 = scalar_lea.vmem %s1, %s425
      %s427 = smul.u32 2, %s23
      %s428 = smul.u32 2, %s23
      %p429 = scmp.lt.s32.totalorder %s428, 3
      %s430 = scalar_select %p429, %s428, 3
      %s431 = smul.addr %s430, 8
      %s432 = scalar_lea.vmem %s12, %s431
      %s433 = smul.u32 2, %s23
      %v435 = vld [vmem:[%s2] sm:$0xf]
      %v436 = vld [vmem:[%s2 + $0x4] sm:$0xf]
      %v437 = vld [vmem:[%s421] sm:$0xff]
      %v438 = vpack.c.bf16 %v437, %v437
      %v441 = vunpack.c.l.b16 %v435
      %v442 = vunpack.c.l.b16 %v436
      %v443 = vpack.c.b16 %v442, %v441
      %vm444 = vcmask 64512
      %v446 = vsel %vm444, %v443, 0
      %vm448 = vcmask 1043456
      %v450 = vsel %vm448, %v438, 0
      %452 = vmatprep.subr.bf16.mxu0 0
      %453 = vmatpush1.bf16.msra.mxu0 0
      %454 = vmatprep.subr.bf16.mxu0 0
      %455 = vmatpush1.bf16.msra.mxu0 0
      %456 = vmatprep.subr.bf16.mxu0 0
      %457 = vmatpush1.bf16.msra.mxu0 0
      %458 = vmatprep.subr.bf16.mxu0 0
      %459 = vmatpush1.bf16.msra.mxu0 0
      %460 = vmatprep.subr.bf16.mxu0 0
      %461 = vmatpush1.bf16.msra.mxu0 0
      %462 = vmatprep.subr.bf16.mxu0 0
      %463 = vmatpush1.bf16.msra.mxu0 0
      %464 = vmatprep.subr.bf16.mxu0 0
      %465 = vmatpush1.bf16.msra.mxu0 0
      %466 = vmatprep.subr.bf16.mxu0 0
      %467 = vmatpush1.bf16.msra.mxu0 %v450
      %468 = vmatprep.subr.bf16.mxu0 0
      %469 = vmatpush2.bf16.msra.mxu0 0
      %470 = vmatprep.subr.bf16.mxu0 0
      %471 = vmatpush2.bf16.msra.mxu0 0
      %472 = vmatprep.subr.bf16.mxu0 0
      %473 = vmatpush2.bf16.msra.mxu0 0
      %474 = vmatprep.subr.bf16.mxu0 0
      %475 = vmatpush2.bf16.msra.mxu0 0
      %476 = vmatprep.subr.bf16.mxu0 0
      %477 = vmatpush2.bf16.msra.mxu0 0
      %478 = vmatprep.subr.bf16.mxu0 0
      %479 = vmatpush2.bf16.msra.mxu0 0
      %480 = vmatprep.subr.bf16.mxu0 0
      %481 = vmatpush2.bf16.msra.mxu0 0
      %482 = vmatprep.subr.bf16.mxu0 0
      %483 = vmatpush2.bf16.msra.mxu0 0
      %484 = vmatprep.mubr.bf16.mxu0 0
      %485 = vmatmul.mubr.bf16.gmra.mxu0 %v446
      %v486 = vpop.f32.mrf.mxu0
      %v487 = vadd.f32 0.0, %v486
      %v488 = vpop.f32.mrf.mxu0
      %v489 = vpop.f32.mrf.mxu0
      %v490 = vadd.f32 0.0, %v489
      %v491 = vpop.f32.mrf.mxu0
      %492 = vdwg.mxu0
      %v493 = vld [vmem:[%s3] sm:$0xf]
      %v494 = vld [vmem:[%s3 + $0x4] sm:$0xf]
      %v495 = vld [vmem:[%s3 + $0x8] sm:$0xf]
      %v496 = vld [vmem:[%s3 + $0xc] sm:$0xf]
      %v497 = vld [vmem:[%s3 + $0x10] sm:$0xf]
      %v498 = vld [vmem:[%s3 + $0x14] sm:$0xf]
      %v499 = vld [vmem:[%s3 + $0x18] sm:$0xf]
      %v500 = vld [vmem:[%s3 + $0x1c] sm:$0xf]
      %v501 = vpack.c.bf16 %v490, %v487
      %v510 = vunpack.c.l.b16 %v493
      %v511 = vunpack.c.l.b16 %v494
      %v512 = vunpack.c.l.b16 %v495
      %v513 = vunpack.c.l.b16 %v496
      %v514 = vunpack.c.l.b16 %v497
      %v515 = vunpack.c.l.b16 %v498
      %v516 = vunpack.c.l.b16 %v499
      %v517 = vunpack.c.l.b16 %v500
      %v518 = vpack.c.b16 %v511, %v510
      %v519 = vpack.c.b16 %v513, %v512
      %v520 = vpack.c.b16 %v515, %v514
      %v521 = vpack.c.b16 %v517, %v516
      %vm526 = vcmask 523264
      %v528 = vsel %vm526, %v501, 0
      %530 = vmatprep.subr.bf16.mxu0 0
      %531 = vmatpush1.bf16.msra.mxu0 0
      %532 = vmatprep.subr.bf16.mxu0 0
      %533 = vmatpush1.bf16.msra.mxu0 0
      %534 = vmatprep.subr.bf16.mxu0 0
      %535 = vmatpush1.bf16.msra.mxu0 0
      %536 = vmatprep.subr.bf16.mxu0 0
      %537 = vmatpush1.bf16.msra.mxu0 0
      %538 = vmatprep.subr.bf16.mxu0 0
      %539 = vmatpush1.bf16.msra.mxu0 %v521
      %540 = vmatprep.subr.bf16.mxu0 0
      %541 = vmatpush1.bf16.msra.mxu0 %v520
      %542 = vmatprep.subr.bf16.mxu0 0
      %543 = vmatpush1.bf16.msra.mxu0 %v519
      %544 = vmatprep.subr.bf16.mxu0 0
      %545 = vmatpush1.bf16.msra.mxu0 %v518
      %546 = vmatprep.subr.bf16.mxu0 0
      %547 = vmatpush2.bf16.msra.mxu0 0
      %548 = vmatprep.subr.bf16.mxu0 0
      %549 = vmatpush2.bf16.msra.mxu0 0
      %550 = vmatprep.subr.bf16.mxu0 0
      %551 = vmatpush2.bf16.msra.mxu0 0
      %552 = vmatprep.subr.bf16.mxu0 0
      %553 = vmatpush2.bf16.msra.mxu0 0
      %554 = vmatprep.subr.bf16.mxu0 0
      %555 = vmatpush2.bf16.msra.mxu0 0
      %556 = vmatprep.subr.bf16.mxu0 0
      %557 = vmatpush2.bf16.msra.mxu0 0
      %558 = vmatprep.subr.bf16.mxu0 0
      %559 = vmatpush2.bf16.msra.mxu0 0
      %560 = vmatprep.subr.bf16.mxu0 0
      %561 = vmatpush2.bf16.msra.mxu0 0
      %562 = vmatprep.mubr.bf16.mxu0 0
      %563 = vmatmul.mubr.bf16.gmra.mxu0 %v528
      %v564 = vpop.f32.mrf.mxu0
      %v565 = vadd.f32 0.0, %v564
      %v566 = vpop.f32.mrf.mxu0
      %v567 = vpop.f32.mrf.mxu0
      %v568 = vadd.f32 0.0, %v567
      %v569 = vpop.f32.mrf.mxu0
      %570 = vdwg.mxu0
      %v571 = vld [vmem:[%s5] sm:$0x1]
      %vm574 = vcmask 1040384
      %v575 = vrot.slane %v565, 7
      %v576 = vrot.slane %v568, 7
      %v577 = vsel %vm574, %v575, %v576
      %v580 = vsel %vm574, 0.0, %v575
      %v581 = vld [vmem:[%s4] sm:$0xf]
      %v582 = vld [vmem:[%s4 + $0x4] sm:$0xf]
      %v583 = vld [vmem:[%s4 + $0x8] sm:$0xf]
      %v584 = vld [vmem:[%s4 + $0xc] sm:$0xf]
      %v585 = vld [vmem:[%s4 + $0x10] sm:$0xf]
      %v586 = vld [vmem:[%s4 + $0x14] sm:$0xf]
      %v587 = vld [vmem:[%s4 + $0x18] sm:$0xf]
      %v588 = vld [vmem:[%s4 + $0x1c] sm:$0xf]
      %v589 = vld [vmem:[%s4 + $0x20] sm:$0xf]
      %v590 = vld [vmem:[%s4 + $0x24] sm:$0xf]
      %v591 = vld [vmem:[%s4 + $0x28] sm:$0xf]
      %v592 = vld [vmem:[%s4 + $0x2c] sm:$0xf]
      %v593 = vld [vmem:[%s4 + $0x30] sm:$0xf]
      %v594 = vld [vmem:[%s4 + $0x34] sm:$0xf]
      %v595 = vld [vmem:[%s4 + $0x38] sm:$0xf]
      %v596 = vld [vmem:[%s4 + $0x3c] sm:$0xf]
      %v597 = vpack.c.bf16 %v577, %v580
      %v614 = vunpack.c.l.b16 %v581
      %v615 = vunpack.c.l.b16 %v582
      %v616 = vunpack.c.l.b16 %v583
      %v617 = vunpack.c.l.b16 %v584
      %v618 = vunpack.c.l.b16 %v585
      %v619 = vunpack.c.l.b16 %v586
      %v620 = vunpack.c.l.b16 %v587
      %v621 = vunpack.c.l.b16 %v588
      %v622 = vunpack.c.l.b16 %v589
      %v623 = vunpack.c.l.b16 %v590
      %v624 = vunpack.c.l.b16 %v591
      %v625 = vunpack.c.l.b16 %v592
      %v626 = vunpack.c.l.b16 %v593
      %v627 = vunpack.c.l.b16 %v594
      %v628 = vunpack.c.l.b16 %v595
      %v629 = vunpack.c.l.b16 %v596
      %v630 = vpack.c.b16 %v615, %v614
      %v631 = vpack.c.b16 %v617, %v616
      %v632 = vpack.c.b16 %v619, %v618
      %v633 = vpack.c.b16 %v621, %v620
      %v634 = vpack.c.b16 %v623, %v622
      %v635 = vpack.c.b16 %v625, %v624
      %v636 = vpack.c.b16 %v627, %v626
      %v637 = vpack.c.b16 %v629, %v628
      %646 = vmatprep.subr.bf16.mxu0 0
      %647 = vmatpush1.bf16.msra.mxu0 %v637
      %648 = vmatprep.subr.bf16.mxu0 0
      %649 = vmatpush1.bf16.msra.mxu0 %v636
      %650 = vmatprep.subr.bf16.mxu0 0
      %651 = vmatpush1.bf16.msra.mxu0 %v635
      %652 = vmatprep.subr.bf16.mxu0 0
      %653 = vmatpush1.bf16.msra.mxu0 %v634
      %654 = vmatprep.subr.bf16.mxu0 0
      %655 = vmatpush1.bf16.msra.mxu0 %v633
      %656 = vmatprep.subr.bf16.mxu0 0
      %657 = vmatpush1.bf16.msra.mxu0 %v632
      %658 = vmatprep.subr.bf16.mxu0 0
      %659 = vmatpush1.bf16.msra.mxu0 %v631
      %660 = vmatprep.subr.bf16.mxu0 0
      %661 = vmatpush1.bf16.msra.mxu0 %v630
      %662 = vmatprep.subr.bf16.mxu0 0
      %663 = vmatpush2.bf16.msra.mxu0 0
      %664 = vmatprep.subr.bf16.mxu0 0
      %665 = vmatpush2.bf16.msra.mxu0 0
      %666 = vmatprep.subr.bf16.mxu0 0
      %667 = vmatpush2.bf16.msra.mxu0 0
      %668 = vmatprep.subr.bf16.mxu0 0
      %669 = vmatpush2.bf16.msra.mxu0 0
      %670 = vmatprep.subr.bf16.mxu0 0
      %671 = vmatpush2.bf16.msra.mxu0 0
      %672 = vmatprep.subr.bf16.mxu0 0
      %673 = vmatpush2.bf16.msra.mxu0 0
      %674 = vmatprep.subr.bf16.mxu0 0
      %675 = vmatpush2.bf16.msra.mxu0 0
      %676 = vmatprep.subr.bf16.mxu0 0
      %677 = vmatpush2.bf16.msra.mxu0 0
      %678 = vmatprep.mubr.bf16.mxu0 0
      %679 = vmatmul.mubr.bf16.gmra.mxu0 %v597
      %v680 = vpop.f32.mrf.mxu0
      %v681 = vadd.f32 0.0, %v680
      %v682 = vpop.f32.mrf.mxu0
      %v683 = vpop.f32.mrf.mxu0
      %v684 = vadd.f32 0.0, %v683
      %v685 = vpop.f32.mrf.mxu0
      %686 = vdwg.mxu0
      %v688 = vlaneseq
      %v689 = vshrl.u32 %v688, 7
      %v690 = vsub.s32 0, %v689
      %v691 = vrot.slane %v571, %v690
      %v693 = vadd.f32 %v691, %v681
      %v694 = vadd.f32 %v691, %v684
      %s695 = scalar_lea.vmem %s4, 64
      %v696 = vld [vmem:[%s695] sm:$0xf]
      %v697 = vld [vmem:[%s695 + $0x4] sm:$0xf]
      %v698 = vld [vmem:[%s695 + $0x8] sm:$0xf]
      %v699 = vld [vmem:[%s695 + $0xc] sm:$0xf]
      %v700 = vld [vmem:[%s695 + $0x10] sm:$0xf]
      %v701 = vld [vmem:[%s695 + $0x14] sm:$0xf]
      %v702 = vld [vmem:[%s695 + $0x18] sm:$0xf]
      %v703 = vld [vmem:[%s695 + $0x1c] sm:$0xf]
      %v704 = vld [vmem:[%s695 + $0x20] sm:$0xf]
      %v705 = vld [vmem:[%s695 + $0x24] sm:$0xf]
      %v706 = vld [vmem:[%s695 + $0x28] sm:$0xf]
      %v707 = vld [vmem:[%s695 + $0x2c] sm:$0xf]
      %v708 = vld [vmem:[%s695 + $0x30] sm:$0xf]
      %v709 = vld [vmem:[%s695 + $0x34] sm:$0xf]
      %v710 = vld [vmem:[%s695 + $0x38] sm:$0xf]
      %v711 = vld [vmem:[%s695 + $0x3c] sm:$0xf]
      %v712 = vpack.c.bf16 %v568, %v565
      %v729 = vunpack.c.l.b16 %v696
      %v730 = vunpack.c.l.b16 %v697
      %v731 = vunpack.c.l.b16 %v698
      %v732 = vunpack.c.l.b16 %v699
      %v733 = vunpack.c.l.b16 %v700
      %v734 = vunpack.c.l.b16 %v701
      %v735 = vunpack.c.l.b16 %v702
      %v736 = vunpack.c.l.b16 %v703
      %v737 = vunpack.c.l.b16 %v704
      %v738 = vunpack.c.l.b16 %v705
      %v739 = vunpack.c.l.b16 %v706
      %v740 = vunpack.c.l.b16 %v707
      %v741 = vunpack.c.l.b16 %v708
      %v742 = vunpack.c.l.b16 %v709
      %v743 = vunpack.c.l.b16 %v710
      %v744 = vunpack.c.l.b16 %v711
      %v745 = vpack.c.b16 %v730, %v729
      %v746 = vpack.c.b16 %v732, %v731
      %v747 = vpack.c.b16 %v734, %v733
      %v748 = vpack.c.b16 %v736, %v735
      %v749 = vpack.c.b16 %v738, %v737
      %v750 = vpack.c.b16 %v740, %v739
      %v751 = vpack.c.b16 %v742, %v741
      %v752 = vpack.c.b16 %v744, %v743
      %761 = vmatprep.subr.bf16.mxu0 0
      %762 = vmatpush1.bf16.msra.mxu0 %v752
      %763 = vmatprep.subr.bf16.mxu0 0
      %764 = vmatpush1.bf16.msra.mxu0 %v751
      %765 = vmatprep.subr.bf16.mxu0 0
      %766 = vmatpush1.bf16.msra.mxu0 %v750
      %767 = vmatprep.subr.bf16.mxu0 0
      %768 = vmatpush1.bf16.msra.mxu0 %v749
      %769 = vmatprep.subr.bf16.mxu0 0
      %770 = vmatpush1.bf16.msra.mxu0 %v748
      %771 = vmatprep.subr.bf16.mxu0 0
      %772 = vmatpush1.bf16.msra.mxu0 %v747
      %773 = vmatprep.subr.bf16.mxu0 0
      %774 = vmatpush1.bf16.msra.mxu0 %v746
      %775 = vmatprep.subr.bf16.mxu0 0
      %776 = vmatpush1.bf16.msra.mxu0 %v745
      %777 = vmatprep.subr.bf16.mxu0 0
      %778 = vmatpush2.bf16.msra.mxu0 0
      %779 = vmatprep.subr.bf16.mxu0 0
      %780 = vmatpush2.bf16.msra.mxu0 0
      %781 = vmatprep.subr.bf16.mxu0 0
      %782 = vmatpush2.bf16.msra.mxu0 0
      %783 = vmatprep.subr.bf16.mxu0 0
      %784 = vmatpush2.bf16.msra.mxu0 0
      %785 = vmatprep.subr.bf16.mxu0 0
      %786 = vmatpush2.bf16.msra.mxu0 0
      %787 = vmatprep.subr.bf16.mxu0 0
      %788 = vmatpush2.bf16.msra.mxu0 0
      %789 = vmatprep.subr.bf16.mxu0 0
      %790 = vmatpush2.bf16.msra.mxu0 0
      %791 = vmatprep.subr.bf16.mxu0 0
      %792 = vmatpush2.bf16.msra.mxu0 0
      %793 = vmatprep.mubr.bf16.mxu0 0
      %794 = vmatmul.mubr.bf16.gmra.mxu0 %v712
      %v795 = vpop.f32.mrf.mxu0
      %v796 = vadd.f32 0.0, %v795
      %v797 = vpop.f32.mrf.mxu0
      %v798 = vpop.f32.mrf.mxu0
      %v799 = vadd.f32 0.0, %v798
      %v800 = vpop.f32.mrf.mxu0
      %801 = vdwg.mxu0
      %v802 = vadd.f32 %v693, %v796
      %v803 = vadd.f32 %v694, %v799
      %vm804 = vcmask 1046528
      %v805 = vrot.slane %v565, 1
      %v806 = vrot.slane %v568, 1
      %v807 = vsel %vm804, %v805, %v806
      %v810 = vsel %vm804, %v806, 0.0
      %s811 = scalar_lea.vmem %s4, 128
      %v812 = vld [vmem:[%s811] sm:$0xf]
      %v813 = vld [vmem:[%s811 + $0x4] sm:$0xf]
      %v814 = vld [vmem:[%s811 + $0x8] sm:$0xf]
      %v815 = vld [vmem:[%s811 + $0xc] sm:$0xf]
      %v816 = vld [vmem:[%s811 + $0x10] sm:$0xf]
      %v817 = vld [vmem:[%s811 + $0x14] sm:$0xf]
      %v818 = vld [vmem:[%s811 + $0x18] sm:$0xf]
      %v819 = vld [vmem:[%s811 + $0x1c] sm:$0xf]
      %v820 = vld [vmem:[%s811 + $0x20] sm:$0xf]
      %v821 = vld [vmem:[%s811 + $0x24] sm:$0xf]
      %v822 = vld [vmem:[%s811 + $0x28] sm:$0xf]
      %v823 = vld [vmem:[%s811 + $0x2c] sm:$0xf]
      %v824 = vld [vmem:[%s811 + $0x30] sm:$0xf]
      %v825 = vld [vmem:[%s811 + $0x34] sm:$0xf]
      %v826 = vld [vmem:[%s811 + $0x38] sm:$0xf]
      %v827 = vld [vmem:[%s811 + $0x3c] sm:$0xf]
      %v828 = vpack.c.bf16 %v810, %v807
      %v845 = vunpack.c.l.b16 %v812
      %v846 = vunpack.c.l.b16 %v813
      %v847 = vunpack.c.l.b16 %v814
      %v848 = vunpack.c.l.b16 %v815
      %v849 = vunpack.c.l.b16 %v816
      %v850 = vunpack.c.l.b16 %v817
      %v851 = vunpack.c.l.b16 %v818
      %v852 = vunpack.c.l.b16 %v819
      %v853 = vunpack.c.l.b16 %v820
      %v854 = vunpack.c.l.b16 %v821
      %v855 = vunpack.c.l.b16 %v822
      %v856 = vunpack.c.l.b16 %v823
      %v857 = vunpack.c.l.b16 %v824
      %v858 = vunpack.c.l.b16 %v825
      %v859 = vunpack.c.l.b16 %v826
      %v860 = vunpack.c.l.b16 %v827
      %v861 = vpack.c.b16 %v846, %v845
      %v862 = vpack.c.b16 %v848, %v847
      %v863 = vpack.c.b16 %v850, %v849
      %v864 = vpack.c.b16 %v852, %v851
      %v865 = vpack.c.b16 %v854, %v853
      %v866 = vpack.c.b16 %v856, %v855
      %v867 = vpack.c.b16 %v858, %v857
      %v868 = vpack.c.b16 %v860, %v859
      %877 = vmatprep.subr.bf16.mxu0 0
      %878 = vmatpush1.bf16.msra.mxu0 %v868
      %879 = vmatprep.subr.bf16.mxu0 0
      %880 = vmatpush1.bf16.msra.mxu0 %v867
      %881 = vmatprep.subr.bf16.mxu0 0
      %882 = vmatpush1.bf16.msra.mxu0 %v866
      %883 = vmatprep.subr.bf16.mxu0 0
      %884 = vmatpush1.bf16.msra.mxu0 %v865
      %885 = vmatprep.subr.bf16.mxu0 0
      %886 = vmatpush1.bf16.msra.mxu0 %v864
      %887 = vmatprep.subr.bf16.mxu0 0
      %888 = vmatpush1.bf16.msra.mxu0 %v863
      %889 = vmatprep.subr.bf16.mxu0 0
      %890 = vmatpush1.bf16.msra.mxu0 %v862
      %891 = vmatprep.subr.bf16.mxu0 0
      %892 = vmatpush1.bf16.msra.mxu0 %v861
      %893 = vmatprep.subr.bf16.mxu0 0
      %894 = vmatpush2.bf16.msra.mxu0 0
      %895 = vmatprep.subr.bf16.mxu0 0
      %896 = vmatpush2.bf16.msra.mxu0 0
      %897 = vmatprep.subr.bf16.mxu0 0
      %898 = vmatpush2.bf16.msra.mxu0 0
      %899 = vmatprep.subr.bf16.mxu0 0
      %900 = vmatpush2.bf16.msra.mxu0 0
      %901 = vmatprep.subr.bf16.mxu0 0
      %902 = vmatpush2.bf16.msra.mxu0 0
      %903 = vmatprep.subr.bf16.mxu0 0
      %904 = vmatpush2.bf16.msra.mxu0 0
      %905 = vmatprep.subr.bf16.mxu0 0
      %906 = vmatpush2.bf16.msra.mxu0 0
      %907 = vmatprep.subr.bf16.mxu0 0
      %908 = vmatpush2.bf16.msra.mxu0 0
      %909 = vmatprep.mubr.bf16.mxu0 0
      %910 = vmatmul.mubr.bf16.gmra.mxu0 %v828
      %v911 = vpop.f32.mrf.mxu0
      %v912 = vadd.f32 0.0, %v911
      %v913 = vpop.f32.mrf.mxu0
      %v914 = vpop.f32.mrf.mxu0
      %v915 = vadd.f32 0.0, %v914
      %v916 = vpop.f32.mrf.mxu0
      %917 = vdwg.mxu0
      %v918 = vadd.f32 %v802, %v912
      %v919 = vadd.f32 %v803, %v915
      %v920 = vld [vmem:[%s6] sm:$0xf]
      %v921 = vld [vmem:[%s6 + $0x4] sm:$0xf]
      %v922 = vld [vmem:[%s6 + $0x8] sm:$0xf]
      %v923 = vld [vmem:[%s6 + $0xc] sm:$0xf]
      %v924 = vld [vmem:[%s6 + $0x10] sm:$0xf]
      %v925 = vld [vmem:[%s6 + $0x14] sm:$0xf]
      %v926 = vld [vmem:[%s6 + $0x18] sm:$0xf]
      %v927 = vld [vmem:[%s6 + $0x1c] sm:$0xf]
      %v928 = vld [vmem:[%s6 + $0x20] sm:$0xf]
      %v929 = vld [vmem:[%s6 + $0x24] sm:$0xf]
      %v930 = vld [vmem:[%s6 + $0x28] sm:$0xf]
      %v931 = vld [vmem:[%s6 + $0x2c] sm:$0xf]
      %v932 = vld [vmem:[%s6 + $0x30] sm:$0xf]
      %v933 = vld [vmem:[%s6 + $0x34] sm:$0xf]
      %v934 = vld [vmem:[%s6 + $0x38] sm:$0xf]
      %v935 = vld [vmem:[%s6 + $0x3c] sm:$0xf]
      %v936 = vpack.c.bf16 %v919, %v918
      %v937 = vld [vmem:[%s7] sm:$0x1]
      %v939 = vlaneseq
      %v940 = vshrl.u32 %v939, 7
      %v941 = vsub.s32 0, %v940
      %v942 = vrot.slane %v937, %v941
      %v960 = vunpack.c.l.b16 %v920
      %v961 = vunpack.c.l.b16 %v921
      %v962 = vunpack.c.l.b16 %v922
      %v963 = vunpack.c.l.b16 %v923
      %v964 = vunpack.c.l.b16 %v924
      %v965 = vunpack.c.l.b16 %v925
      %v966 = vunpack.c.l.b16 %v926
      %v967 = vunpack.c.l.b16 %v927
      %v968 = vunpack.c.l.b16 %v928
      %v969 = vunpack.c.l.b16 %v929
      %v970 = vunpack.c.l.b16 %v930
      %v971 = vunpack.c.l.b16 %v931
      %v972 = vunpack.c.l.b16 %v932
      %v973 = vunpack.c.l.b16 %v933
      %v974 = vunpack.c.l.b16 %v934
      %v975 = vunpack.c.l.b16 %v935
      %v976 = vpack.c.b16 %v961, %v960
      %v977 = vpack.c.b16 %v963, %v962
      %v978 = vpack.c.b16 %v965, %v964
      %v979 = vpack.c.b16 %v967, %v966
      %v980 = vpack.c.b16 %v969, %v968
      %v981 = vpack.c.b16 %v971, %v970
      %v982 = vpack.c.b16 %v973, %v972
      %v983 = vpack.c.b16 %v975, %v974
      %992 = vmatprep.subr.bf16.mxu0 0
      %993 = vmatpush1.bf16.msra.mxu0 %v983
      %994 = vmatprep.subr.bf16.mxu0 0
      %995 = vmatpush1.bf16.msra.mxu0 %v982
      %996 = vmatprep.subr.bf16.mxu0 0
      %997 = vmatpush1.bf16.msra.mxu0 %v981
      %998 = vmatprep.subr.bf16.mxu0 0
      %999 = vmatpush1.bf16.msra.mxu0 %v980
      %1000 = vmatprep.subr.bf16.mxu0 0
      %1001 = vmatpush1.bf16.msra.mxu0 %v979
      %1002 = vmatprep.subr.bf16.mxu0 0
      %1003 = vmatpush1.bf16.msra.mxu0 %v978
      %1004 = vmatprep.subr.bf16.mxu0 0
      %1005 = vmatpush1.bf16.msra.mxu0 %v977
      %1006 = vmatprep.subr.bf16.mxu0 0
      %1007 = vmatpush1.bf16.msra.mxu0 %v976
      %1008 = vmatprep.subr.bf16.mxu0 0
      %1009 = vmatpush2.bf16.msra.mxu0 0
      %1010 = vmatprep.subr.bf16.mxu0 0
      %1011 = vmatpush2.bf16.msra.mxu0 0
      %1012 = vmatprep.subr.bf16.mxu0 0
      %1013 = vmatpush2.bf16.msra.mxu0 0
      %1014 = vmatprep.subr.bf16.mxu0 0
      %1015 = vmatpush2.bf16.msra.mxu0 0
      %1016 = vmatprep.subr.bf16.mxu0 0
      %1017 = vmatpush2.bf16.msra.mxu0 0
      %1018 = vmatprep.subr.bf16.mxu0 0
      %1019 = vmatpush2.bf16.msra.mxu0 0
      %1020 = vmatprep.subr.bf16.mxu0 0
      %1021 = vmatpush2.bf16.msra.mxu0 0
      %1022 = vmatprep.subr.bf16.mxu0 0
      %1023 = vmatpush2.bf16.msra.mxu0 0
      %1024 = vmatprep.mubr.bf16.mxu0 0
      %1025 = vmatmul.mubr.bf16.gmra.mxu0 %v936
      %v1026 = vpop.f32.mrf.mxu0
      %v1027 = vadd.f32 %v942, %v1026
      %v1028 = vpop.f32.mrf.mxu0
      %v1029 = vpop.f32.mrf.mxu0
      %v1030 = vadd.f32 %v942, %v1029
      %v1031 = vpop.f32.mrf.mxu0
      %1032 = vdwg.mxu0
      %v1033 = vld [vmem:[%s426] sm:$0xff]
      %v1034 = vld [vmem:[%s426 + $0x8] sm:$0xff]
      %v1035 = vld [vmem:[%s8] sm:$0xf]
      %v1036 = vld [vmem:[%s8 + $0x4] sm:$0xf]
      %v1037 = vld [vmem:[%s8 + $0x8] sm:$0xf]
      %v1038 = vld [vmem:[%s8 + $0xc] sm:$0xf]
      %v1039 = vld [vmem:[%s8 + $0x10] sm:$0xf]
      %v1040 = vld [vmem:[%s8 + $0x14] sm:$0xf]
      %v1041 = vld [vmem:[%s8 + $0x18] sm:$0xf]
      %v1042 = vld [vmem:[%s8 + $0x1c] sm:$0xf]
      %v1043 = vld [vmem:[%s8 + $0x20] sm:$0xf]
      %v1044 = vld [vmem:[%s8 + $0x24] sm:$0xf]
      %v1045 = vld [vmem:[%s8 + $0x28] sm:$0xf]
      %v1046 = vld [vmem:[%s8 + $0x2c] sm:$0xf]
      %v1047 = vld [vmem:[%s8 + $0x30] sm:$0xf]
      %v1048 = vld [vmem:[%s8 + $0x34] sm:$0xf]
      %v1049 = vld [vmem:[%s8 + $0x38] sm:$0xf]
      %v1050 = vld [vmem:[%s8 + $0x3c] sm:$0xf]
      %v1051 = vpack.c.bf16 %v1034, %v1033
      %v1052 = vld [vmem:[%s9] sm:$0x1]
      %v1054 = vlaneseq
      %v1055 = vshrl.u32 %v1054, 7
      %v1056 = vsub.s32 0, %v1055
      %v1057 = vrot.slane %v1052, %v1056
      %v1075 = vunpack.c.l.b16 %v1035
      %v1076 = vunpack.c.l.b16 %v1036
      %v1077 = vunpack.c.l.b16 %v1037
      %v1078 = vunpack.c.l.b16 %v1038
      %v1079 = vunpack.c.l.b16 %v1039
      %v1080 = vunpack.c.l.b16 %v1040
      %v1081 = vunpack.c.l.b16 %v1041
      %v1082 = vunpack.c.l.b16 %v1042
      %v1083 = vunpack.c.l.b16 %v1043
      %v1084 = vunpack.c.l.b16 %v1044
      %v1085 = vunpack.c.l.b16 %v1045
      %v1086 = vunpack.c.l.b16 %v1046
      %v1087 = vunpack.c.l.b16 %v1047
      %v1088 = vunpack.c.l.b16 %v1048
      %v1089 = vunpack.c.l.b16 %v1049
      %v1090 = vunpack.c.l.b16 %v1050
      %v1091 = vpack.c.b16 %v1076, %v1075
      %v1092 = vpack.c.b16 %v1078, %v1077
      %v1093 = vpack.c.b16 %v1080, %v1079
      %v1094 = vpack.c.b16 %v1082, %v1081
      %v1095 = vpack.c.b16 %v1084, %v1083
      %v1096 = vpack.c.b16 %v1086, %v1085
      %v1097 = vpack.c.b16 %v1088, %v1087
      %v1098 = vpack.c.b16 %v1090, %v1089
      %1107 = vmatprep.subr.bf16.mxu0 0
      %1108 = vmatpush1.bf16.msra.mxu0 %v1098
      %1109 = vmatprep.subr.bf16.mxu0 0
      %1110 = vmatpush1.bf16.msra.mxu0 %v1097
      %1111 = vmatprep.subr.bf16.mxu0 0
      %1112 = vmatpush1.bf16.msra.mxu0 %v1096
      %1113 = vmatprep.subr.bf16.mxu0 0
      %1114 = vmatpush1.bf16.msra.mxu0 %v1095
      %1115 = vmatprep.subr.bf16.mxu0 0
      %1116 = vmatpush1.bf16.msra.mxu0 %v1094
      %1117 = vmatprep.subr.bf16.mxu0 0
      %1118 = vmatpush1.bf16.msra.mxu0 %v1093
      %1119 = vmatprep.subr.bf16.mxu0 0
      %1120 = vmatpush1.bf16.msra.mxu0 %v1092
      %1121 = vmatprep.subr.bf16.mxu0 0
      %1122 = vmatpush1.bf16.msra.mxu0 %v1091
      %1123 = vmatprep.subr.bf16.mxu0 0
      %1124 = vmatpush2.bf16.msra.mxu0 0
      %1125 = vmatprep.subr.bf16.mxu0 0
      %1126 = vmatpush2.bf16.msra.mxu0 0
      %1127 = vmatprep.subr.bf16.mxu0 0
      %1128 = vmatpush2.bf16.msra.mxu0 0
      %1129 = vmatprep.subr.bf16.mxu0 0
      %1130 = vmatpush2.bf16.msra.mxu0 0
      %1131 = vmatprep.subr.bf16.mxu0 0
      %1132 = vmatpush2.bf16.msra.mxu0 0
      %1133 = vmatprep.subr.bf16.mxu0 0
      %1134 = vmatpush2.bf16.msra.mxu0 0
      %1135 = vmatprep.subr.bf16.mxu0 0
      %1136 = vmatpush2.bf16.msra.mxu0 0
      %1137 = vmatprep.subr.bf16.mxu0 0
      %1138 = vmatpush2.bf16.msra.mxu0 0
      %1139 = vmatprep.mubr.bf16.mxu0 0
      %1140 = vmatmul.mubr.bf16.gmra.mxu0 %v1051
      %v1141 = vpop.f32.mrf.mxu0
      %v1142 = vadd.f32 %v1057, %v1141
      %v1143 = vpop.f32.mrf.mxu0
      %v1144 = vpop.f32.mrf.mxu0
      %v1145 = vadd.f32 %v1057, %v1144
      %v1146 = vpop.f32.mrf.mxu0
      %1147 = vdwg.mxu0
      %v1148 = vld [vmem:[%s11] sm:$0x1]
      %v1153 = vrot.slane %v1027, 7
      %v1154 = vrot.slane %v1142, 7
      %v1155 = vrot.slane %v1030, 7
      %v1156 = vsel %vm574, %v1153, %v1155
      %v1157 = vrot.slane %v1145, 7
      %v1158 = vsel %vm574, %v1154, %v1157
      %v1163 = vsel %vm574, 0.0, %v1153
      %v1164 = vsel %vm574, 0.0, %v1154
      %v1165 = vld [vmem:[%s10] sm:$0xf]
      %v1166 = vld [vmem:[%s10 + $0x4] sm:$0xf]
      %v1167 = vld [vmem:[%s10 + $0x8] sm:$0xf]
      %v1168 = vld [vmem:[%s10 + $0xc] sm:$0xf]
      %v1169 = vld [vmem:[%s10 + $0x10] sm:$0xf]
      %v1170 = vld [vmem:[%s10 + $0x14] sm:$0xf]
      %v1171 = vld [vmem:[%s10 + $0x18] sm:$0xf]
      %v1172 = vld [vmem:[%s10 + $0x1c] sm:$0xf]
      %v1173 = vld [vmem:[%s10 + $0x20] sm:$0xf]
      %v1174 = vld [vmem:[%s10 + $0x24] sm:$0xf]
      %v1175 = vld [vmem:[%s10 + $0x28] sm:$0xf]
      %v1176 = vld [vmem:[%s10 + $0x2c] sm:$0xf]
      %v1177 = vld [vmem:[%s10 + $0x30] sm:$0xf]
      %v1178 = vld [vmem:[%s10 + $0x34] sm:$0xf]
      %v1179 = vld [vmem:[%s10 + $0x38] sm:$0xf]
      %v1180 = vld [vmem:[%s10 + $0x3c] sm:$0xf]
      %v1181 = vld [vmem:[%s10 + $0x40] sm:$0xf]
      %v1182 = vld [vmem:[%s10 + $0x44] sm:$0xf]
      %v1183 = vld [vmem:[%s10 + $0x48] sm:$0xf]
      %v1184 = vld [vmem:[%s10 + $0x4c] sm:$0xf]
      %v1185 = vld [vmem:[%s10 + $0x50] sm:$0xf]
      %v1186 = vld [vmem:[%s10 + $0x54] sm:$0xf]
      %v1187 = vld [vmem:[%s10 + $0x58] sm:$0xf]
      %v1188 = vld [vmem:[%s10 + $0x5c] sm:$0xf]
      %v1189 = vld [vmem:[%s10 + $0x60] sm:$0xf]
      %v1190 = vld [vmem:[%s10 + $0x64] sm:$0xf]
      %v1191 = vld [vmem:[%s10 + $0x68] sm:$0xf]
      %v1192 = vld [vmem:[%s10 + $0x6c] sm:$0xf]
      %v1193 = vld [vmem:[%s10 + $0x70] sm:$0xf]
      %v1194 = vld [vmem:[%s10 + $0x74] sm:$0xf]
      %v1195 = vld [vmem:[%s10 + $0x78] sm:$0xf]
      %v1196 = vld [vmem:[%s10 + $0x7c] sm:$0xf]
      %v1197 = vpack.c.bf16 %v1156, %v1163
      %v1198 = vpack.c.bf16 %v1158, %v1164
      %v1231 = vunpack.c.l.b16 %v1165
      %v1232 = vunpack.c.l.b16 %v1166
      %v1233 = vunpack.c.l.b16 %v1167
      %v1234 = vunpack.c.l.b16 %v1168
      %v1235 = vunpack.c.l.b16 %v1169
      %v1236 = vunpack.c.l.b16 %v1170
      %v1237 = vunpack.c.l.b16 %v1171
      %v1238 = vunpack.c.l.b16 %v1172
      %v1239 = vunpack.c.l.b16 %v1173
      %v1240 = vunpack.c.l.b16 %v1174
      %v1241 = vunpack.c.l.b16 %v1175
      %v1242 = vunpack.c.l.b16 %v1176
      %v1243 = vunpack.c.l.b16 %v1177
      %v1244 = vunpack.c.l.b16 %v1178
      %v1245 = vunpack.c.l.b16 %v1179
      %v1246 = vunpack.c.l.b16 %v1180
      %v1247 = vunpack.c.l.b16 %v1181
      %v1248 = vunpack.c.l.b16 %v1182
      %v1249 = vunpack.c.l.b16 %v1183
      %v1250 = vunpack.c.l.b16 %v1184
      %v1251 = vunpack.c.l.b16 %v1185
      %v1252 = vunpack.c.l.b16 %v1186
      %v1253 = vunpack.c.l.b16 %v1187
      %v1254 = vunpack.c.l.b16 %v1188
      %v1255 = vunpack.c.l.b16 %v1189
      %v1256 = vunpack.c.l.b16 %v1190
      %v1257 = vunpack.c.l.b16 %v1191
      %v1258 = vunpack.c.l.b16 %v1192
      %v1259 = vunpack.c.l.b16 %v1193
      %v1260 = vunpack.c.l.b16 %v1194
      %v1261 = vunpack.c.l.b16 %v1195
      %v1262 = vunpack.c.l.b16 %v1196
      %v1263 = vpack.c.b16 %v1232, %v1231
      %v1264 = vpack.c.b16 %v1234, %v1233
      %v1265 = vpack.c.b16 %v1236, %v1235
      %v1266 = vpack.c.b16 %v1238, %v1237
      %v1267 = vpack.c.b16 %v1240, %v1239
      %v1268 = vpack.c.b16 %v1242, %v1241
      %v1269 = vpack.c.b16 %v1244, %v1243
      %v1270 = vpack.c.b16 %v1246, %v1245
      %v1271 = vpack.c.b16 %v1248, %v1247
      %v1272 = vpack.c.b16 %v1250, %v1249
      %v1273 = vpack.c.b16 %v1252, %v1251
      %v1274 = vpack.c.b16 %v1254, %v1253
      %v1275 = vpack.c.b16 %v1256, %v1255
      %v1276 = vpack.c.b16 %v1258, %v1257
      %v1277 = vpack.c.b16 %v1260, %v1259
      %v1278 = vpack.c.b16 %v1262, %v1261
      %1295 = vmatprep.subr.bf16.mxu0 0
      %1296 = vmatpush1.bf16.msra.mxu0 %v1270
      %1297 = vmatprep.subr.bf16.mxu0 0
      %1298 = vmatpush1.bf16.msra.mxu0 %v1269
      %1299 = vmatprep.subr.bf16.mxu0 0
      %1300 = vmatpush1.bf16.msra.mxu0 %v1268
      %1301 = vmatprep.subr.bf16.mxu0 0
      %1302 = vmatpush1.bf16.msra.mxu0 %v1267
      %1303 = vmatprep.subr.bf16.mxu0 0
      %1304 = vmatpush1.bf16.msra.mxu0 %v1266
      %1305 = vmatprep.subr.bf16.mxu0 0
      %1306 = vmatpush1.bf16.msra.mxu0 %v1265
      %1307 = vmatprep.subr.bf16.mxu0 0
      %1308 = vmatpush1.bf16.msra.mxu0 %v1264
      %1309 = vmatprep.subr.bf16.mxu0 0
      %1310 = vmatpush1.bf16.msra.mxu0 %v1263
      %1311 = vmatprep.subr.bf16.mxu0 0
      %1312 = vmatpush2.bf16.msra.mxu0 %v1278
      %1313 = vmatprep.subr.bf16.mxu0 0
      %1314 = vmatpush2.bf16.msra.mxu0 %v1277
      %1315 = vmatprep.subr.bf16.mxu0 0
      %1316 = vmatpush2.bf16.msra.mxu0 %v1276
      %1317 = vmatprep.subr.bf16.mxu0 0
      %1318 = vmatpush2.bf16.msra.mxu0 %v1275
      %1319 = vmatprep.subr.bf16.mxu0 0
      %1320 = vmatpush2.bf16.msra.mxu0 %v1274
      %1321 = vmatprep.subr.bf16.mxu0 0
      %1322 = vmatpush2.bf16.msra.mxu0 %v1273
      %1323 = vmatprep.subr.bf16.mxu0 0
      %1324 = vmatpush2.bf16.msra.mxu0 %v1272
      %1325 = vmatprep.subr.bf16.mxu0 0
      %1326 = vmatpush2.bf16.msra.mxu0 %v1271
      %1327 = vmatprep.mubr.bf16.mxu0 %v1198
      %1328 = vmatmul.mubr.bf16.gmra.mxu0 %v1197
      %v1329 = vpop.f32.mrf.mxu0
      %v1330 = vadd.f32 0.0, %v1329
      %v1331 = vpop.f32.mrf.mxu0
      %v1332 = vpop.f32.mrf.mxu0
      %v1333 = vadd.f32 0.0, %v1332
      %v1334 = vpop.f32.mrf.mxu0
      %1335 = vdwg.mxu0
      %v1337 = vlaneseq
      %v1338 = vshrl.u32 %v1337, 7
      %v1339 = vsub.s32 0, %v1338
      %v1340 = vrot.slane %v1148, %v1339
      %v1342 = vadd.f32 %v1340, %v1330
      %v1343 = vadd.f32 %v1340, %v1333
      %s1344 = scalar_lea.vmem %s10, 128
      %v1345 = vld [vmem:[%s1344] sm:$0xf]
      %v1346 = vld [vmem:[%s1344 + $0x4] sm:$0xf]
      %v1347 = vld [vmem:[%s1344 + $0x8] sm:$0xf]
      %v1348 = vld [vmem:[%s1344 + $0xc] sm:$0xf]
      %v1349 = vld [vmem:[%s1344 + $0x10] sm:$0xf]
      %v1350 = vld [vmem:[%s1344 + $0x14] sm:$0xf]
      %v1351 = vld [vmem:[%s1344 + $0x18] sm:$0xf]
      %v1352 = vld [vmem:[%s1344 + $0x1c] sm:$0xf]
      %v1353 = vld [vmem:[%s1344 + $0x20] sm:$0xf]
      %v1354 = vld [vmem:[%s1344 + $0x24] sm:$0xf]
      %v1355 = vld [vmem:[%s1344 + $0x28] sm:$0xf]
      %v1356 = vld [vmem:[%s1344 + $0x2c] sm:$0xf]
      %v1357 = vld [vmem:[%s1344 + $0x30] sm:$0xf]
      %v1358 = vld [vmem:[%s1344 + $0x34] sm:$0xf]
      %v1359 = vld [vmem:[%s1344 + $0x38] sm:$0xf]
      %v1360 = vld [vmem:[%s1344 + $0x3c] sm:$0xf]
      %v1361 = vld [vmem:[%s1344 + $0x40] sm:$0xf]
      %v1362 = vld [vmem:[%s1344 + $0x44] sm:$0xf]
      %v1363 = vld [vmem:[%s1344 + $0x48] sm:$0xf]
      %v1364 = vld [vmem:[%s1344 + $0x4c] sm:$0xf]
      %v1365 = vld [vmem:[%s1344 + $0x50] sm:$0xf]
      %v1366 = vld [vmem:[%s1344 + $0x54] sm:$0xf]
      %v1367 = vld [vmem:[%s1344 + $0x58] sm:$0xf]
      %v1368 = vld [vmem:[%s1344 + $0x5c] sm:$0xf]
      %v1369 = vld [vmem:[%s1344 + $0x60] sm:$0xf]
      %v1370 = vld [vmem:[%s1344 + $0x64] sm:$0xf]
      %v1371 = vld [vmem:[%s1344 + $0x68] sm:$0xf]
      %v1372 = vld [vmem:[%s1344 + $0x6c] sm:$0xf]
      %v1373 = vld [vmem:[%s1344 + $0x70] sm:$0xf]
      %v1374 = vld [vmem:[%s1344 + $0x74] sm:$0xf]
      %v1375 = vld [vmem:[%s1344 + $0x78] sm:$0xf]
      %v1376 = vld [vmem:[%s1344 + $0x7c] sm:$0xf]
      %v1377 = vpack.c.bf16 %v1030, %v1027
      %v1378 = vpack.c.bf16 %v1145, %v1142
      %v1411 = vunpack.c.l.b16 %v1345
      %v1412 = vunpack.c.l.b16 %v1346
      %v1413 = vunpack.c.l.b16 %v1347
      %v1414 = vunpack.c.l.b16 %v1348
      %v1415 = vunpack.c.l.b16 %v1349
      %v1416 = vunpack.c.l.b16 %v1350
      %v1417 = vunpack.c.l.b16 %v1351
      %v1418 = vunpack.c.l.b16 %v1352
      %v1419 = vunpack.c.l.b16 %v1353
      %v1420 = vunpack.c.l.b16 %v1354
      %v1421 = vunpack.c.l.b16 %v1355
      %v1422 = vunpack.c.l.b16 %v1356
      %v1423 = vunpack.c.l.b16 %v1357
      %v1424 = vunpack.c.l.b16 %v1358
      %v1425 = vunpack.c.l.b16 %v1359
      %v1426 = vunpack.c.l.b16 %v1360
      %v1427 = vunpack.c.l.b16 %v1361
      %v1428 = vunpack.c.l.b16 %v1362
      %v1429 = vunpack.c.l.b16 %v1363
      %v1430 = vunpack.c.l.b16 %v1364
      %v1431 = vunpack.c.l.b16 %v1365
      %v1432 = vunpack.c.l.b16 %v1366
      %v1433 = vunpack.c.l.b16 %v1367
      %v1434 = vunpack.c.l.b16 %v1368
      %v1435 = vunpack.c.l.b16 %v1369
      %v1436 = vunpack.c.l.b16 %v1370
      %v1437 = vunpack.c.l.b16 %v1371
      %v1438 = vunpack.c.l.b16 %v1372
      %v1439 = vunpack.c.l.b16 %v1373
      %v1440 = vunpack.c.l.b16 %v1374
      %v1441 = vunpack.c.l.b16 %v1375
      %v1442 = vunpack.c.l.b16 %v1376
      %v1443 = vpack.c.b16 %v1412, %v1411
      %v1444 = vpack.c.b16 %v1414, %v1413
      %v1445 = vpack.c.b16 %v1416, %v1415
      %v1446 = vpack.c.b16 %v1418, %v1417
      %v1447 = vpack.c.b16 %v1420, %v1419
      %v1448 = vpack.c.b16 %v1422, %v1421
      %v1449 = vpack.c.b16 %v1424, %v1423
      %v1450 = vpack.c.b16 %v1426, %v1425
      %v1451 = vpack.c.b16 %v1428, %v1427
      %v1452 = vpack.c.b16 %v1430, %v1429
      %v1453 = vpack.c.b16 %v1432, %v1431
      %v1454 = vpack.c.b16 %v1434, %v1433
      %v1455 = vpack.c.b16 %v1436, %v1435
      %v1456 = vpack.c.b16 %v1438, %v1437
      %v1457 = vpack.c.b16 %v1440, %v1439
      %v1458 = vpack.c.b16 %v1442, %v1441
      %1475 = vmatprep.subr.bf16.mxu0 0
      %1476 = vmatpush1.bf16.msra.mxu0 %v1450
      %1477 = vmatprep.subr.bf16.mxu0 0
      %1478 = vmatpush1.bf16.msra.mxu0 %v1449
      %1479 = vmatprep.subr.bf16.mxu0 0
      %1480 = vmatpush1.bf16.msra.mxu0 %v1448
      %1481 = vmatprep.subr.bf16.mxu0 0
      %1482 = vmatpush1.bf16.msra.mxu0 %v1447
      %1483 = vmatprep.subr.bf16.mxu0 0
      %1484 = vmatpush1.bf16.msra.mxu0 %v1446
      %1485 = vmatprep.subr.bf16.mxu0 0
      %1486 = vmatpush1.bf16.msra.mxu0 %v1445
      %1487 = vmatprep.subr.bf16.mxu0 0
      %1488 = vmatpush1.bf16.msra.mxu0 %v1444
      %1489 = vmatprep.subr.bf16.mxu0 0
      %1490 = vmatpush1.bf16.msra.mxu0 %v1443
      %1491 = vmatprep.subr.bf16.mxu0 0
      %1492 = vmatpush2.bf16.msra.mxu0 %v1458
      %1493 = vmatprep.subr.bf16.mxu0 0
      %1494 = vmatpush2.bf16.msra.mxu0 %v1457
      %1495 = vmatprep.subr.bf16.mxu0 0
      %1496 = vmatpush2.bf16.msra.mxu0 %v1456
      %1497 = vmatprep.subr.bf16.mxu0 0
      %1498 = vmatpush2.bf16.msra.mxu0 %v1455
      %1499 = vmatprep.subr.bf16.mxu0 0
      %1500 = vmatpush2.bf16.msra.mxu0 %v1454
      %1501 = vmatprep.subr.bf16.mxu0 0
      %1502 = vmatpush2.bf16.msra.mxu0 %v1453
      %1503 = vmatprep.subr.bf16.mxu0 0
      %1504 = vmatpush2.bf16.msra.mxu0 %v1452
      %1505 = vmatprep.subr.bf16.mxu0 0
      %1506 = vmatpush2.bf16.msra.mxu0 %v1451
      %1507 = vmatprep.mubr.bf16.mxu0 %v1378
      %1508 = vmatmul.mubr.bf16.gmra.mxu0 %v1377
      %v1509 = vpop.f32.mrf.mxu0
      %v1510 = vadd.f32 0.0, %v1509
      %v1511 = vpop.f32.mrf.mxu0
      %v1512 = vpop.f32.mrf.mxu0
      %v1513 = vadd.f32 0.0, %v1512
      %v1514 = vpop.f32.mrf.mxu0
      %1515 = vdwg.mxu0
      %v1516 = vadd.f32 %v1342, %v1510
      %v1517 = vadd.f32 %v1343, %v1513
      %v1518 = vrot.slane %v1027, 1
      %v1519 = vrot.slane %v1030, 1
      %v1520 = vsel %vm804, %v1518, %v1519
      %v1521 = vrot.slane %v1142, 1
      %v1522 = vrot.slane %v1145, 1
      %v1523 = vsel %vm804, %v1521, %v1522
      %v1528 = vsel %vm804, %v1519, 0.0
      %v1529 = vsel %vm804, %v1522, 0.0
      %s1530 = scalar_lea.vmem %s10, 256
      %v1531 = vld [vmem:[%s1530] sm:$0xf]
      %v1532 = vld [vmem:[%s1530 + $0x4] sm:$0xf]
      %v1533 = vld [vmem:[%s1530 + $0x8] sm:$0xf]
      %v1534 = vld [vmem:[%s1530 + $0xc] sm:$0xf]
      %v1535 = vld [vmem:[%s1530 + $0x10] sm:$0xf]
      %v1536 = vld [vmem:[%s1530 + $0x14] sm:$0xf]
      %v1537 = vld [vmem:[%s1530 + $0x18] sm:$0xf]
      %v1538 = vld [vmem:[%s1530 + $0x1c] sm:$0xf]
      %v1539 = vld [vmem:[%s1530 + $0x20] sm:$0xf]
      %v1540 = vld [vmem:[%s1530 + $0x24] sm:$0xf]
      %v1541 = vld [vmem:[%s1530 + $0x28] sm:$0xf]
      %v1542 = vld [vmem:[%s1530 + $0x2c] sm:$0xf]
      %v1543 = vld [vmem:[%s1530 + $0x30] sm:$0xf]
      %v1544 = vld [vmem:[%s1530 + $0x34] sm:$0xf]
      %v1545 = vld [vmem:[%s1530 + $0x38] sm:$0xf]
      %v1546 = vld [vmem:[%s1530 + $0x3c] sm:$0xf]
      %v1547 = vld [vmem:[%s1530 + $0x40] sm:$0xf]
      %v1548 = vld [vmem:[%s1530 + $0x44] sm:$0xf]
      %v1549 = vld [vmem:[%s1530 + $0x48] sm:$0xf]
      %v1550 = vld [vmem:[%s1530 + $0x4c] sm:$0xf]
      %v1551 = vld [vmem:[%s1530 + $0x50] sm:$0xf]
      %v1552 = vld [vmem:[%s1530 + $0x54] sm:$0xf]
      %v1553 = vld [vmem:[%s1530 + $0x58] sm:$0xf]
      %v1554 = vld [vmem:[%s1530 + $0x5c] sm:$0xf]
      %v1555 = vld [vmem:[%s1530 + $0x60] sm:$0xf]
      %v1556 = vld [vmem:[%s1530 + $0x64] sm:$0xf]
      %v1557 = vld [vmem:[%s1530 + $0x68] sm:$0xf]
      %v1558 = vld [vmem:[%s1530 + $0x6c] sm:$0xf]
      %v1559 = vld [vmem:[%s1530 + $0x70] sm:$0xf]
      %v1560 = vld [vmem:[%s1530 + $0x74] sm:$0xf]
      %v1561 = vld [vmem:[%s1530 + $0x78] sm:$0xf]
      %v1562 = vld [vmem:[%s1530 + $0x7c] sm:$0xf]
      %v1563 = vpack.c.bf16 %v1528, %v1520
      %v1564 = vpack.c.bf16 %v1529, %v1523
      %v1597 = vunpack.c.l.b16 %v1531
      %v1598 = vunpack.c.l.b16 %v1532
      %v1599 = vunpack.c.l.b16 %v1533
      %v1600 = vunpack.c.l.b16 %v1534
      %v1601 = vunpack.c.l.b16 %v1535
      %v1602 = vunpack.c.l.b16 %v1536
      %v1603 = vunpack.c.l.b16 %v1537
      %v1604 = vunpack.c.l.b16 %v1538
      %v1605 = vunpack.c.l.b16 %v1539
      %v1606 = vunpack.c.l.b16 %v1540
      %v1607 = vunpack.c.l.b16 %v1541
      %v1608 = vunpack.c.l.b16 %v1542
      %v1609 = vunpack.c.l.b16 %v1543
      %v1610 = vunpack.c.l.b16 %v1544
      %v1611 = vunpack.c.l.b16 %v1545
      %v1612 = vunpack.c.l.b16 %v1546
      %v1613 = vunpack.c.l.b16 %v1547
      %v1614 = vunpack.c.l.b16 %v1548
      %v1615 = vunpack.c.l.b16 %v1549
      %v1616 = vunpack.c.l.b16 %v1550
      %v1617 = vunpack.c.l.b16 %v1551
      %v1618 = vunpack.c.l.b16 %v1552
      %v1619 = vunpack.c.l.b16 %v1553
      %v1620 = vunpack.c.l.b16 %v1554
      %v1621 = vunpack.c.l.b16 %v1555
      %v1622 = vunpack.c.l.b16 %v1556
      %v1623 = vunpack.c.l.b16 %v1557
      %v1624 = vunpack.c.l.b16 %v1558
      %v1625 = vunpack.c.l.b16 %v1559
      %v1626 = vunpack.c.l.b16 %v1560
      %v1627 = vunpack.c.l.b16 %v1561
      %v1628 = vunpack.c.l.b16 %v1562
      %v1629 = vpack.c.b16 %v1598, %v1597
      %v1630 = vpack.c.b16 %v1600, %v1599
      %v1631 = vpack.c.b16 %v1602, %v1601
      %v1632 = vpack.c.b16 %v1604, %v1603
      %v1633 = vpack.c.b16 %v1606, %v1605
      %v1634 = vpack.c.b16 %v1608, %v1607
      %v1635 = vpack.c.b16 %v1610, %v1609
      %v1636 = vpack.c.b16 %v1612, %v1611
      %v1637 = vpack.c.b16 %v1614, %v1613
      %v1638 = vpack.c.b16 %v1616, %v1615
      %v1639 = vpack.c.b16 %v1618, %v1617
      %v1640 = vpack.c.b16 %v1620, %v1619
      %v1641 = vpack.c.b16 %v1622, %v1621
      %v1642 = vpack.c.b16 %v1624, %v1623
      %v1643 = vpack.c.b16 %v1626, %v1625
      %v1644 = vpack.c.b16 %v1628, %v1627
      %1661 = vmatprep.subr.bf16.mxu0 0
      %1662 = vmatpush1.bf16.msra.mxu0 %v1636
      %1663 = vmatprep.subr.bf16.mxu0 0
      %1664 = vmatpush1.bf16.msra.mxu0 %v1635
      %1665 = vmatprep.subr.bf16.mxu0 0
      %1666 = vmatpush1.bf16.msra.mxu0 %v1634
      %1667 = vmatprep.subr.bf16.mxu0 0
      %1668 = vmatpush1.bf16.msra.mxu0 %v1633
      %1669 = vmatprep.subr.bf16.mxu0 0
      %1670 = vmatpush1.bf16.msra.mxu0 %v1632
      %1671 = vmatprep.subr.bf16.mxu0 0
      %1672 = vmatpush1.bf16.msra.mxu0 %v1631
      %1673 = vmatprep.subr.bf16.mxu0 0
      %1674 = vmatpush1.bf16.msra.mxu0 %v1630
      %1675 = vmatprep.subr.bf16.mxu0 0
      %1676 = vmatpush1.bf16.msra.mxu0 %v1629
      %1677 = vmatprep.subr.bf16.mxu0 0
      %1678 = vmatpush2.bf16.msra.mxu0 %v1644
      %1679 = vmatprep.subr.bf16.mxu0 0
      %1680 = vmatpush2.bf16.msra.mxu0 %v1643
      %1681 = vmatprep.subr.bf16.mxu0 0
      %1682 = vmatpush2.bf16.msra.mxu0 %v1642
      %1683 = vmatprep.subr.bf16.mxu0 0
      %1684 = vmatpush2.bf16.msra.mxu0 %v1641
      %1685 = vmatprep.subr.bf16.mxu0 0
      %1686 = vmatpush2.bf16.msra.mxu0 %v1640
      %1687 = vmatprep.subr.bf16.mxu0 0
      %1688 = vmatpush2.bf16.msra.mxu0 %v1639
      %1689 = vmatprep.subr.bf16.mxu0 0
      %1690 = vmatpush2.bf16.msra.mxu0 %v1638
      %1691 = vmatprep.subr.bf16.mxu0 0
      %1692 = vmatpush2.bf16.msra.mxu0 %v1637
      %1693 = vmatprep.mubr.bf16.mxu0 %v1564
      %1694 = vmatmul.mubr.bf16.gmra.mxu0 %v1563
      %v1695 = vpop.f32.mrf.mxu0
      %v1696 = vadd.f32 0.0, %v1695
      %v1697 = vpop.f32.mrf.mxu0
      %v1698 = vpop.f32.mrf.mxu0
      %v1699 = vadd.f32 0.0, %v1698
      %v1700 = vpop.f32.mrf.mxu0
      %1701 = vdwg.mxu0
      %v1702 = vadd.f32 %v1516, %v1696
      %v1703 = vadd.f32 %v1517, %v1699
      %1704 = vst [vmem:[%s432] sm:$0xff] %v1702
      %1705 = vst [vmem:[%s432 + $0x8] sm:$0xff] %v1703
      %s1706 = smul.u32 2, %s23
      %p1707 = scmp.lt.s32.totalorder %s1706, 3
      %s1708 = scalar_select %p1707, %s1706, 3
      %s1709 = smul.addr %s1708, 8
      %s1710 = scalar_lea.vmem %s12, %s1709
      // Predicated region
      $region69: #{decoder_block_forward.1} parent=67 // pred_check
        %p1711 = pneg %p303
      $region70: #{decoder_block_forward.1} parent=67 // pred_check_branch
        %1713 = sbr.rel (%p1711) target = $region72
      $region71: #{decoder_block_forward.1} parent=67 // pred_region
        %s1714 = smul.u32 2, %s23
      $region72: #{decoder_block_forward.1} parent=67 // pred_fallthru
        _
    $region68: #{decoder_block_forward.1} parent=5 // pred_fallthru
      _
    %p1715 = scmp.le.s32.totalorder 2, %s18
    // Predicated region
    $region73: #{decoder_block_forward.1} parent=5 // pred_check
      %p1716 = pneg %p1715
    $region74: #{decoder_block_forward.1} parent=5 // pred_check_branch
      %1718 = sbr.rel (%p1716) target = $region76
    $region75: #{decoder_block_forward.1} parent=5 // pred_region
      %s1719 = ssub.s32 %s18, 2
      // Predicated region
      $region77: #{decoder_block_forward.1} parent=75 // pred_check
        %p1720 = pneg %p309
      $region78: #{decoder_block_forward.1} parent=75 // pred_check_branch
        %1722 = sbr.rel (%p1720) target = $region80
      $region79: #{decoder_block_forward.1} parent=75 // pred_region
        %s1723 = smul.u32 2, %s24
        %p1724 = scmp.lt.s32.totalorder %s1723, 3
        %s1725 = scalar_select %p1724, %s1723, 3
        %s1726 = smul.addr %s1725, 8
        %s1727 = scalar_lea.vmem %s12, %s1726
      $region80: #{decoder_block_forward.1} parent=75 // pred_fallthru
        _
    $region76: #{decoder_block_forward.1} parent=5 // pred_fallthru
      _
  $region6: #{decoder_block_forward.1} parent=0 // loop_footer
    %s22 = sadd.s32 1, %s18
  $region7: #{decoder_block_forward.1} parent=0 // loop_footer_branch
    %17 = sbr.rel target = $region3
  $region8: #{decoder_block_forward.1} parent=0 // loop_exit
    _

</llo_original>
